<compile_context>
chip_gen: v7x
topology: tpu7x:2x2x1
jax: 0.10.0
libtpu: 0.0.40
codegen_flags: <defaults>
</compile_context>

<pallas_src>
import functools

import jax
import jax.numpy as jnp
from jax.experimental import pallas as pl
from jax.experimental.pallas import tpu as pltpu


def _round_up(x, m):
    return ((x + m - 1) // m) * m


def _log_sigmoid(x):
    # Inputs are clamped to [-10, 10] before this, so exp(-x) <= e^10: safe in f32.
    return -jnp.log1p(jnp.exp(-x))


def _vmem_limit_bytes():
    """Generation-aware scoped-VMEM limit (v7x: 64 MiB physical; v5e/v6e: 128 MiB)."""
    try:
        cap = pltpu.get_tpu_info().vmem_capacity_bytes
    except Exception:
        cap = 64 * 1024 * 1024             # conservative fallback (v7x-sized VMEM)
    if cap <= 64 * 1024 * 1024:
        return 48 * 1024 * 1024            # v7x-class: keep headroom under 64 MiB
    return 64 * 1024 * 1024                # v5e / v6e: 128 MiB physical VMEM


def w2v_kernel(inputs_idx_ref, target_idx_ref, neg_idx_ref,   # scalar prefetch (SMEM, 1D)
               emb_in_hbm, emb_out_hbm,                       # embedding tables (HBM)
               out_ref,                                       # (1, 8, 128) per-tile partial
               ein_buf, eout_buf, eneg_buf, sem,              # VMEM gather scratch + DMA sems
               *, b_tile, n_ctx, n_neg, d_valid, n_planes, n_rows):
    w = eout_buf.shape[-1]                 # packed row width (lanes)
    t = pl.program_id(0)
    row0 = t * b_tile

    # ---- fused embedding gather: loop-form DMA issue -------------------------
    # Positive-path rows (target + context) are issued first so they complete
    # first; the negative rows stay in flight while the positive path computes.
    @pl.loop(0, b_tile)
    def _issue_pos(b):
        r = row0 + b
        pltpu.make_async_copy(emb_out_hbm.at[target_idx_ref[r]],
                              eout_buf.at[b], sem.at[0]).start()
        for j in range(n_ctx):             # small static constant: unrolled
            pltpu.make_async_copy(emb_in_hbm.at[inputs_idx_ref[r * n_ctx + j]],
                                  ein_buf.at[b, j], sem.at[1]).start()

    @pl.loop(0, b_tile)
    def _issue_neg(b):
        r = row0 + b
        for j in range(n_neg):
            pltpu.make_async_copy(emb_out_hbm.at[neg_idx_ref[r * n_neg + j]],
                                  eneg_buf.at[b, j], sem.at[2]).start()

    # ---- accumulated waits (positive groups only, for gather/compute overlap) --
    # Every copy in a group is one (w,) 32-bit row into the group buffer, and DMA
    # semaphores count bytes, so waiting once on the whole buffer waits for all
    # b_tile (resp. b_tile*C / b_tile*K) row copies of that group.
    pltpu.make_async_copy(eout_buf, eout_buf, sem.at[0]).wait()
    pltpu.make_async_copy(ein_buf, ein_buf, sem.at[1]).wait()

    def planes(x):
        """Unpack a gathered block into f32 feature 'planes'."""
        if n_planes == 1:
            return (x,)                    # f32 tables: already f32
        # uint32 lane l packs bf16 elements (2l, 2l+1); low half = element 2l.
        lo = pltpu.bitcast(x << 16, jnp.float32)
        hi = pltpu.bitcast(x & jnp.uint32(0xFFFF0000), jnp.float32)
        return (lo, hi)

    eout_p = planes(eout_buf[...])         # n_planes x (b_tile, w) f32

    # bag = sum over context rows, accumulated slice-by-slice (bounds vreg live
    # ranges; never materialises the whole (b_tile, C, w) block as one value).
    bag_p = [jnp.zeros((b_tile, w), jnp.float32) for _ in range(n_planes)]
    for j in range(n_ctx):
        cj = planes(ein_buf[:, j, :])
        for p in range(n_planes):
            bag_p[p] = bag_p[p] + cj[p]

    # positive score: sum_d logsigmoid(clamp(bag_d * eout_d)), masking padded
    # feature elements.  Kept in f32 (no bf16 VPU/EUP on v5e).
    lane = jax.lax.broadcasted_iota(jnp.int32, (b_tile, w), 1)
    pos = jnp.zeros((b_tile, 1), jnp.float32)
    for p in range(n_planes):
        x = jnp.clip(bag_p[p] * eout_p[p], -10.0, 10.0)
        valid = (lane * n_planes + p) < d_valid
        pos = pos + jnp.sum(jnp.where(valid, _log_sigmoid(x), 0.0),
                            axis=1, keepdims=True)

    # Only now wait on the negative-row gather (it was hidden behind the positive
    # path above), then do the K-loop one (b_tile, w) slice at a time.
    pltpu.make_async_copy(eneg_buf, eneg_buf, sem.at[2]).wait()

    # Padded feature elements are zero in both operands -> no mask needed here.
    neg = jnp.zeros((b_tile, 1), jnp.float32)
    for kk in range(n_neg):
        nk = planes(eneg_buf[:, kk, :])
        prod = jnp.zeros((b_tile, 1), jnp.float32)
        for p in range(n_planes):
            prod = prod + jnp.sum(nk[p] * eout_p[p], axis=1, keepdims=True)
        neg = neg + _log_sigmoid(-jnp.clip(prod, -10.0, 10.0))

    # Mask out batch-padding rows (B was rounded up to num_tiles * b_tile).
    row = row0 + jax.lax.broadcasted_iota(jnp.int32, (b_tile, 1), 0)
    tile_sum = jnp.sum(jnp.where(row < n_rows, pos + neg, 0.0))

    # Lane-dense per-tile partial (unmasked 8x128 store); wrapper reads [t, 0, 0].
    out_ref[...] = jnp.full(out_ref.shape, tile_sum, dtype=jnp.float32)


def _prep_table(emb, d_pad, packed):
    """Zero-pad the feature dim and (optionally) pack 2xbf16 -> uint32 rows."""
    V, D = emb.shape
    emb = emb.astype(jnp.float32)
    if d_pad != D:
        emb = jnp.pad(emb, ((0, 0), (0, d_pad - D)))
    if not packed:
        return emb                                           # (V, d_pad) f32
    bf = emb.astype(jnp.bfloat16).reshape(V, d_pad // 2, 2)
    return jax.lax.bitcast_convert_type(bf, jnp.uint32)      # (V, d_pad//2) u32


def word2vec_loss(emb_in, emb_out, inputs, target_word, negative_samples,
                  *, b_tile=None, table_dtype=jnp.bfloat16):
    """Forward pass of Word2VecNet (SGNS loss) -> scalar loss.

    table_dtype selects the HBM storage precision of the embedding tables
    (bf16 halves gather bytes; all arithmetic stays f32).  Use jnp.float32 to
    match the f32 PyTorch module bit-for-tolerance.
    """
    V, D = emb_in.shape
    B, C = inputs.shape
    K = negative_samples.shape[1]

    packed = (jnp.dtype(table_dtype) == jnp.dtype(jnp.bfloat16)) and (D % 2 == 0)
    if packed:
        # Pack pairs of bf16 features into uint32 lanes so every gathered row is
        # a plain 32-bit, 128-lane-multiple DMA (no sub-word strided VMEM writes).
        d_pad = _round_up(D, 256)
        w = d_pad // 2
        buf_dtype = jnp.uint32
        n_planes = 2
    else:
        d_pad = _round_up(D, 128)
        w = d_pad
        buf_dtype = jnp.float32
        n_planes = 1
    # Note: for D << 128 the lane padding wastes gather bytes either way; keep
    # production embedding_size >= 128 (see review) — the demo uses a tiny D.

    tbl_in = _prep_table(emb_in, d_pad, packed)
    tbl_out = _prep_table(emb_out, d_pad, packed)

    vmem_limit = _vmem_limit_bytes()
    if b_tile is None:
        # Gather working set (+ slack for the unpacked f32 temporaries) stays
        # under half the scoped-VMEM limit.
        budget = vmem_limit // 2
        row_bytes = (C + K + 1 + 8) * w * 4
        b_tile = max(8, (budget // row_bytes) // 8 * 8)
        b_tile = min(b_tile, _round_up(B, 8))
        nt = pl.cdiv(B, b_tile)
        if nt % 2 == 1 and b_tile > 8:
            # v7x: the "parallel" grid axis is sharded across 2 TensorCores —
            # prefer an even tile count so neither core idles on a tail tile.
            alt = max(8, _round_up(pl.cdiv(B, nt + 1), 8))
            if pl.cdiv(B, alt) % 2 == 0:
                b_tile = alt
    assert b_tile % 8 == 0 and b_tile > 0, "b_tile must be a positive multiple of 8"

    num_tiles = pl.cdiv(B, b_tile)
    b_pad = num_tiles * b_tile

    # 1-D int32 index arrays (SMEM pads 2-D arrays' last dim to 128 words),
    # padded to the full tile grid; padding rows are masked inside the kernel.
    def pad_rows(a):
        return jnp.pad(a, ((0, b_pad - B),) + ((0, 0),) * (a.ndim - 1))

    inputs_flat = pad_rows(inputs.astype(jnp.int32)).reshape(-1)            # (b_pad*C,)
    target_flat = pad_rows(target_word.astype(jnp.int32)).reshape(-1)       # (b_pad,)
    neg_flat = pad_rows(negative_samples.astype(jnp.int32)).reshape(-1)     # (b_pad*K,)

    kernel = functools.partial(w2v_kernel, b_tile=b_tile, n_ctx=C, n_neg=K,
                               d_valid=D, n_planes=n_planes, n_rows=B)

    grid_spec = pltpu.PrefetchScalarGridSpec(
        num_scalar_prefetch=3,                  # inputs, target, neg indices -> SMEM
        grid=(num_tiles,),
        in_specs=[
            pl.BlockSpec(memory_space=pl.ANY),  # emb_in table stays in HBM
            pl.BlockSpec(memory_space=pl.ANY),  # emb_out table stays in HBM
        ],
        out_specs=pl.BlockSpec((1, 8, 128), lambda t, *_: (t, 0, 0)),
        scratch_shapes=[
            pltpu.VMEM((b_tile, C, w), buf_dtype),   # gathered context rows
            pltpu.VMEM((b_tile, w), buf_dtype),      # gathered target rows
            pltpu.VMEM((b_tile, K, w), buf_dtype),   # gathered negative rows
            pltpu.SemaphoreType.DMA((3,)),           # one sem per gather group
        ],
    )

    partials = pl.pallas_call(
        kernel,
        out_shape=jax.ShapeDtypeStruct((num_tiles, 8, 128), jnp.float32),
        grid_spec=grid_spec,
        compiler_params=pltpu.CompilerParams(
            dimension_semantics=("parallel",),   # tiles are fully independent
            vmem_limit_bytes=vmem_limit,
        ),
    )(inputs_flat, target_flat, neg_flat, tbl_in, tbl_out)

    # per-tile partial sums of (pos + neg) -> -mean over the true batch
    return -(jnp.sum(partials[:, 0, 0]) / B)


def _reference_loss(emb_in, emb_out, inputs, target_word, negative_samples):
    # Pure-JAX reference mirroring the PyTorch forward exactly.
    ein = emb_in[inputs]
    eout = emb_out[target_word]
    eneg = emb_out[negative_samples]
    bag = ein.sum(axis=1)
    pos = jax.nn.log_sigmoid(jnp.clip(bag * eout, -10.0, 10.0)).sum(axis=1)
    prod = jnp.einsum("bkd,bd->bk", eneg, eout)
    neg = jax.nn.log_sigmoid(-jnp.clip(prod, -10.0, 10.0)).sum(axis=1)
    return -jnp.mean(pos + neg)


if __name__ == "__main__":
    # B=batch, C=seq_len (context), V=vocab_size, D=embedding_size, K=#neg samples.
    # B=14 with b_tile=8 exercises the batch-padding / row-mask path (2 tiles,
    # last tile has 2 masked padding rows).
    B, C, V, D, K = 14, 8, 64, 32, 8

    key = jax.random.PRNGKey(0)
    k1, k2, k3, k4, k5 = jax.random.split(key, 5)

    initrange = 1.0 / D
    # embeddings_in: uniform(-1/D, 1/D) as in __init__.
    emb_in = jax.random.uniform(k1, (V, D), jnp.float32, -initrange, initrange)
    # __init__ zero-inits embeddings_out (degenerate loss); use a small uniform
    # init instead so the kernel is exercised non-trivially.
    emb_out = jax.random.uniform(k2, (V, D), jnp.float32, -initrange, initrange)

    inputs = jax.random.randint(k3, (B, C), 0, V, dtype=jnp.int32)
    target_word = jax.random.randint(k4, (B,), 0, V, dtype=jnp.int32)
    negative_samples = jax.random.randint(k5, (B, K), 0, V, dtype=jnp.int32)

    # 1) f32 tables: matches the f32 PyTorch module's forward numerics.
    loss_f32 = word2vec_loss(emb_in, emb_out, inputs, target_word,
                             negative_samples, b_tile=8,
                             table_dtype=jnp.float32)
    loss_f32 = jax.block_until_ready(loss_f32)
    ref_f32 = _reference_loss(emb_in, emb_out, inputs, target_word,
                              negative_samples)
    assert jnp.allclose(loss_f32, ref_f32, rtol=1e-4, atol=1e-5), (loss_f32, ref_f32)

    # 2) bf16-packed tables (default): compute stays f32, so it matches the
    #    reference evaluated on bf16-rounded tables.
    loss_bf16 = word2vec_loss(emb_in, emb_out, inputs, target_word,
                              negative_samples, b_tile=8)
    loss_bf16 = jax.block_until_ready(loss_bf16)
    r_in = emb_in.astype(jnp.bfloat16).astype(jnp.float32)
    r_out = emb_out.astype(jnp.bfloat16).astype(jnp.float32)
    ref_bf16 = _reference_loss(r_in, r_out, inputs, target_word,
                               negative_samples)
    assert jnp.allclose(loss_bf16, ref_bf16, rtol=1e-4, atol=1e-5), (loss_bf16, ref_bf16)

    print("KERNEL_OK")
</pallas_src>

<mosaic_0001>
module attributes {stable_mosaic.version = 11 : i64} {
  func.func @w2v_kernel(%arg0: i32, %arg1: memref<128xi32, #tpu.memory_space<smem>>, %arg2: memref<16xi32, #tpu.memory_space<smem>>, %arg3: memref<128xi32, #tpu.memory_space<smem>>, %arg4: memref<64x128xf32, #tpu.memory_space<any>>, %arg5: memref<64x128xf32, #tpu.memory_space<any>>, %arg6: memref<1x8x128xf32, #tpu.memory_space<vmem>>, %arg7: memref<8x8x128xf32, #tpu.memory_space<vmem>>, %arg8: memref<8x128xf32, #tpu.memory_space<vmem>>, %arg9: memref<8x8x128xf32, #tpu.memory_space<vmem>>, %arg10: memref<3x!tpu.dma_semaphore, #tpu.memory_space<semaphore_mem>>) attributes {dimension_semantics = [#tpu.dimension_semantics<parallel>], iteration_bounds = array<i64: 2>, scalar_prefetch = 3 : i64, scratch_operands = 4 : i64, tpu.core_type = #tpu.core_type<tc>, window_params = [{}, {}, {transform_indices = @transform_2, window_bounds = array<i64: 1, 8, 128>}]} {
    %c8_i32 = arith.constant 8 : i32
    %0 = arith.muli %arg0, %c8_i32 : i32
    %c0_i32 = arith.constant 0 : i32
    %c8_i32_0 = arith.constant 8 : i32
    %1 = arith.addi %c0_i32, %c8_i32_0 : i32
    %c1_i32 = arith.constant 1 : i32
    scf.for %arg11 = %c0_i32 to %1 step %c1_i32  : i32 {
      %c1_i32_121 = arith.constant 1 : i32
      %234 = arith.muli %arg11, %c1_i32_121 : i32
      %c0_i32_122 = arith.constant 0 : i32
      %235 = arith.addi %c0_i32_122, %234 : i32
      %236 = arith.addi %0, %235 : i32
      %237 = arith.index_cast %236 : i32 to index
      %238 = memref.load %arg2[%237] : memref<16xi32, #tpu.memory_space<smem>>
      %c0_i32_123 = arith.constant 0 : i32
      %c0_i32_124 = arith.constant 0 : i32
      %239 = tpu.memref_slice %arg5[%238, %c0_i32_124] : memref<64x128xf32, #tpu.memory_space<any>> -> memref<1x128xf32, #tpu.memory_space<any>>
      %240 = tpu.memref_squeeze %239 : memref<1x128xf32, #tpu.memory_space<any>> -> memref<128xf32, #tpu.memory_space<any>>
      %c0_i32_125 = arith.constant 0 : i32
      %241 = tpu.memref_slice %arg8[%235, %c0_i32_125] : memref<8x128xf32, #tpu.memory_space<vmem>> -> memref<1x128xf32, #tpu.memory_space<vmem>>
      %242 = tpu.memref_squeeze %241 : memref<1x128xf32, #tpu.memory_space<vmem>> -> memref<128xf32, #tpu.memory_space<vmem>>
      %243 = tpu.memref_slice %arg10[%c0_i32_123] : memref<3x!tpu.dma_semaphore, #tpu.memory_space<semaphore_mem>> -> memref<1x!tpu.dma_semaphore, #tpu.memory_space<semaphore_mem>>
      %244 = tpu.memref_squeeze %243 : memref<1x!tpu.dma_semaphore, #tpu.memory_space<semaphore_mem>> -> memref<!tpu.dma_semaphore, #tpu.memory_space<semaphore_mem>>
      tpu.enqueue_dma source(%240 : memref<128xf32, #tpu.memory_space<any>>) target(%242 : memref<128xf32, #tpu.memory_space<vmem>>) target_semaphore(%244 : memref<!tpu.dma_semaphore, #tpu.memory_space<semaphore_mem>>)
      %c8_i32_126 = arith.constant 8 : i32
      %245 = arith.muli %236, %c8_i32_126 : i32
      %c0_i32_127 = arith.constant 0 : i32
      %246 = arith.addi %245, %c0_i32_127 : i32
      %247 = arith.index_cast %246 : i32 to index
      %248 = memref.load %arg1[%247] : memref<128xi32, #tpu.memory_space<smem>>
      %c0_i32_128 = arith.constant 0 : i32
      %c1_i32_129 = arith.constant 1 : i32
      %c0_i32_130 = arith.constant 0 : i32
      %249 = tpu.memref_slice %arg4[%248, %c0_i32_130] : memref<64x128xf32, #tpu.memory_space<any>> -> memref<1x128xf32, #tpu.memory_space<any>>
      %250 = tpu.memref_squeeze %249 : memref<1x128xf32, #tpu.memory_space<any>> -> memref<128xf32, #tpu.memory_space<any>>
      %c0_i32_131 = arith.constant 0 : i32
      %251 = tpu.memref_slice %arg7[%235, %c0_i32_128, %c0_i32_131] : memref<8x8x128xf32, #tpu.memory_space<vmem>> -> memref<1x1x128xf32, #tpu.memory_space<vmem>>
      %252 = tpu.memref_squeeze %251 : memref<1x1x128xf32, #tpu.memory_space<vmem>> -> memref<128xf32, #tpu.memory_space<vmem>>
      %253 = tpu.memref_slice %arg10[%c1_i32_129] : memref<3x!tpu.dma_semaphore, #tpu.memory_space<semaphore_mem>> -> memref<1x!tpu.dma_semaphore, #tpu.memory_space<semaphore_mem>>
      %254 = tpu.memref_squeeze %253 : memref<1x!tpu.dma_semaphore, #tpu.memory_space<semaphore_mem>> -> memref<!tpu.dma_semaphore, #tpu.memory_space<semaphore_mem>>
      tpu.enqueue_dma source(%250 : memref<128xf32, #tpu.memory_space<any>>) target(%252 : memref<128xf32, #tpu.memory_space<vmem>>) target_semaphore(%254 : memref<!tpu.dma_semaphore, #tpu.memory_space<semaphore_mem>>)
      %c8_i32_132 = arith.constant 8 : i32
      %255 = arith.muli %236, %c8_i32_132 : i32
      %c1_i32_133 = arith.constant 1 : i32
      %256 = arith.addi %255, %c1_i32_133 : i32
      %257 = arith.index_cast %256 : i32 to index
      %258 = memref.load %arg1[%257] : memref<128xi32, #tpu.memory_space<smem>>
      %c1_i32_134 = arith.constant 1 : i32
      %c1_i32_135 = arith.constant 1 : i32
      %c0_i32_136 = arith.constant 0 : i32
      %259 = tpu.memref_slice %arg4[%258, %c0_i32_136] : memref<64x128xf32, #tpu.memory_space<any>> -> memref<1x128xf32, #tpu.memory_space<any>>
      %260 = tpu.memref_squeeze %259 : memref<1x128xf32, #tpu.memory_space<any>> -> memref<128xf32, #tpu.memory_space<any>>
      %c0_i32_137 = arith.constant 0 : i32
      %261 = tpu.memref_slice %arg7[%235, %c1_i32_134, %c0_i32_137] : memref<8x8x128xf32, #tpu.memory_space<vmem>> -> memref<1x1x128xf32, #tpu.memory_space<vmem>>
      %262 = tpu.memref_squeeze %261 : memref<1x1x128xf32, #tpu.memory_space<vmem>> -> memref<128xf32, #tpu.memory_space<vmem>>
      %263 = tpu.memref_slice %arg10[%c1_i32_135] : memref<3x!tpu.dma_semaphore, #tpu.memory_space<semaphore_mem>> -> memref<1x!tpu.dma_semaphore, #tpu.memory_space<semaphore_mem>>
      %264 = tpu.memref_squeeze %263 : memref<1x!tpu.dma_semaphore, #tpu.memory_space<semaphore_mem>> -> memref<!tpu.dma_semaphore, #tpu.memory_space<semaphore_mem>>
      tpu.enqueue_dma source(%260 : memref<128xf32, #tpu.memory_space<any>>) target(%262 : memref<128xf32, #tpu.memory_space<vmem>>) target_semaphore(%264 : memref<!tpu.dma_semaphore, #tpu.memory_space<semaphore_mem>>)
      %c8_i32_138 = arith.constant 8 : i32
      %265 = arith.muli %236, %c8_i32_138 : i32
      %c2_i32_139 = arith.constant 2 : i32
      %266 = arith.addi %265, %c2_i32_139 : i32
      %267 = arith.index_cast %266 : i32 to index
      %268 = memref.load %arg1[%267] : memref<128xi32, #tpu.memory_space<smem>>
      %c2_i32_140 = arith.constant 2 : i32
      %c1_i32_141 = arith.constant 1 : i32
      %c0_i32_142 = arith.constant 0 : i32
      %269 = tpu.memref_slice %arg4[%268, %c0_i32_142] : memref<64x128xf32, #tpu.memory_space<any>> -> memref<1x128xf32, #tpu.memory_space<any>>
      %270 = tpu.memref_squeeze %269 : memref<1x128xf32, #tpu.memory_space<any>> -> memref<128xf32, #tpu.memory_space<any>>
      %c0_i32_143 = arith.constant 0 : i32
      %271 = tpu.memref_slice %arg7[%235, %c2_i32_140, %c0_i32_143] : memref<8x8x128xf32, #tpu.memory_space<vmem>> -> memref<1x1x128xf32, #tpu.memory_space<vmem>>
      %272 = tpu.memref_squeeze %271 : memref<1x1x128xf32, #tpu.memory_space<vmem>> -> memref<128xf32, #tpu.memory_space<vmem>>
      %273 = tpu.memref_slice %arg10[%c1_i32_141] : memref<3x!tpu.dma_semaphore, #tpu.memory_space<semaphore_mem>> -> memref<1x!tpu.dma_semaphore, #tpu.memory_space<semaphore_mem>>
      %274 = tpu.memref_squeeze %273 : memref<1x!tpu.dma_semaphore, #tpu.memory_space<semaphore_mem>> -> memref<!tpu.dma_semaphore, #tpu.memory_space<semaphore_mem>>
      tpu.enqueue_dma source(%270 : memref<128xf32, #tpu.memory_space<any>>) target(%272 : memref<128xf32, #tpu.memory_space<vmem>>) target_semaphore(%274 : memref<!tpu.dma_semaphore, #tpu.memory_space<semaphore_mem>>)
      %c8_i32_144 = arith.constant 8 : i32
      %275 = arith.muli %236, %c8_i32_144 : i32
      %c3_i32 = arith.constant 3 : i32
      %276 = arith.addi %275, %c3_i32 : i32
      %277 = arith.index_cast %276 : i32 to index
      %278 = memref.load %arg1[%277] : memref<128xi32, #tpu.memory_space<smem>>
      %c3_i32_145 = arith.constant 3 : i32
      %c1_i32_146 = arith.constant 1 : i32
      %c0_i32_147 = arith.constant 0 : i32
      %279 = tpu.memref_slice %arg4[%278, %c0_i32_147] : memref<64x128xf32, #tpu.memory_space<any>> -> memref<1x128xf32, #tpu.memory_space<any>>
      %280 = tpu.memref_squeeze %279 : memref<1x128xf32, #tpu.memory_space<any>> -> memref<128xf32, #tpu.memory_space<any>>
      %c0_i32_148 = arith.constant 0 : i32
      %281 = tpu.memref_slice %arg7[%235, %c3_i32_145, %c0_i32_148] : memref<8x8x128xf32, #tpu.memory_space<vmem>> -> memref<1x1x128xf32, #tpu.memory_space<vmem>>
      %282 = tpu.memref_squeeze %281 : memref<1x1x128xf32, #tpu.memory_space<vmem>> -> memref<128xf32, #tpu.memory_space<vmem>>
      %283 = tpu.memref_slice %arg10[%c1_i32_146] : memref<3x!tpu.dma_semaphore, #tpu.memory_space<semaphore_mem>> -> memref<1x!tpu.dma_semaphore, #tpu.memory_space<semaphore_mem>>
      %284 = tpu.memref_squeeze %283 : memref<1x!tpu.dma_semaphore, #tpu.memory_space<semaphore_mem>> -> memref<!tpu.dma_semaphore, #tpu.memory_space<semaphore_mem>>
      tpu.enqueue_dma source(%280 : memref<128xf32, #tpu.memory_space<any>>) target(%282 : memref<128xf32, #tpu.memory_space<vmem>>) target_semaphore(%284 : memref<!tpu.dma_semaphore, #tpu.memory_space<semaphore_mem>>)
      %c8_i32_149 = arith.constant 8 : i32
      %285 = arith.muli %236, %c8_i32_149 : i32
      %c4_i32 = arith.constant 4 : i32
      %286 = arith.addi %285, %c4_i32 : i32
      %287 = arith.index_cast %286 : i32 to index
      %288 = memref.load %arg1[%287] : memref<128xi32, #tpu.memory_space<smem>>
      %c4_i32_150 = arith.constant 4 : i32
      %c1_i32_151 = arith.constant 1 : i32
      %c0_i32_152 = arith.constant 0 : i32
      %289 = tpu.memref_slice %arg4[%288, %c0_i32_152] : memref<64x128xf32, #tpu.memory_space<any>> -> memref<1x128xf32, #tpu.memory_space<any>>
      %290 = tpu.memref_squeeze %289 : memref<1x128xf32, #tpu.memory_space<any>> -> memref<128xf32, #tpu.memory_space<any>>
      %c0_i32_153 = arith.constant 0 : i32
      %291 = tpu.memref_slice %arg7[%235, %c4_i32_150, %c0_i32_153] : memref<8x8x128xf32, #tpu.memory_space<vmem>> -> memref<1x1x128xf32, #tpu.memory_space<vmem>>
      %292 = tpu.memref_squeeze %291 : memref<1x1x128xf32, #tpu.memory_space<vmem>> -> memref<128xf32, #tpu.memory_space<vmem>>
      %293 = tpu.memref_slice %arg10[%c1_i32_151] : memref<3x!tpu.dma_semaphore, #tpu.memory_space<semaphore_mem>> -> memref<1x!tpu.dma_semaphore, #tpu.memory_space<semaphore_mem>>
      %294 = tpu.memref_squeeze %293 : memref<1x!tpu.dma_semaphore, #tpu.memory_space<semaphore_mem>> -> memref<!tpu.dma_semaphore, #tpu.memory_space<semaphore_mem>>
      tpu.enqueue_dma source(%290 : memref<128xf32, #tpu.memory_space<any>>) target(%292 : memref<128xf32, #tpu.memory_space<vmem>>) target_semaphore(%294 : memref<!tpu.dma_semaphore, #tpu.memory_space<semaphore_mem>>)
      %c8_i32_154 = arith.constant 8 : i32
      %295 = arith.muli %236, %c8_i32_154 : i32
      %c5_i32 = arith.constant 5 : i32
      %296 = arith.addi %295, %c5_i32 : i32
      %297 = arith.index_cast %296 : i32 to index
      %298 = memref.load %arg1[%297] : memref<128xi32, #tpu.memory_space<smem>>
      %c5_i32_155 = arith.constant 5 : i32
      %c1_i32_156 = arith.constant 1 : i32
      %c0_i32_157 = arith.constant 0 : i32
      %299 = tpu.memref_slice %arg4[%298, %c0_i32_157] : memref<64x128xf32, #tpu.memory_space<any>> -> memref<1x128xf32, #tpu.memory_space<any>>
      %300 = tpu.memref_squeeze %299 : memref<1x128xf32, #tpu.memory_space<any>> -> memref<128xf32, #tpu.memory_space<any>>
      %c0_i32_158 = arith.constant 0 : i32
      %301 = tpu.memref_slice %arg7[%235, %c5_i32_155, %c0_i32_158] : memref<8x8x128xf32, #tpu.memory_space<vmem>> -> memref<1x1x128xf32, #tpu.memory_space<vmem>>
      %302 = tpu.memref_squeeze %301 : memref<1x1x128xf32, #tpu.memory_space<vmem>> -> memref<128xf32, #tpu.memory_space<vmem>>
      %303 = tpu.memref_slice %arg10[%c1_i32_156] : memref<3x!tpu.dma_semaphore, #tpu.memory_space<semaphore_mem>> -> memref<1x!tpu.dma_semaphore, #tpu.memory_space<semaphore_mem>>
      %304 = tpu.memref_squeeze %303 : memref<1x!tpu.dma_semaphore, #tpu.memory_space<semaphore_mem>> -> memref<!tpu.dma_semaphore, #tpu.memory_space<semaphore_mem>>
      tpu.enqueue_dma source(%300 : memref<128xf32, #tpu.memory_space<any>>) target(%302 : memref<128xf32, #tpu.memory_space<vmem>>) target_semaphore(%304 : memref<!tpu.dma_semaphore, #tpu.memory_space<semaphore_mem>>)
      %c8_i32_159 = arith.constant 8 : i32
      %305 = arith.muli %236, %c8_i32_159 : i32
      %c6_i32 = arith.constant 6 : i32
      %306 = arith.addi %305, %c6_i32 : i32
      %307 = arith.index_cast %306 : i32 to index
      %308 = memref.load %arg1[%307] : memref<128xi32, #tpu.memory_space<smem>>
      %c6_i32_160 = arith.constant 6 : i32
      %c1_i32_161 = arith.constant 1 : i32
      %c0_i32_162 = arith.constant 0 : i32
      %309 = tpu.memref_slice %arg4[%308, %c0_i32_162] : memref<64x128xf32, #tpu.memory_space<any>> -> memref<1x128xf32, #tpu.memory_space<any>>
      %310 = tpu.memref_squeeze %309 : memref<1x128xf32, #tpu.memory_space<any>> -> memref<128xf32, #tpu.memory_space<any>>
      %c0_i32_163 = arith.constant 0 : i32
      %311 = tpu.memref_slice %arg7[%235, %c6_i32_160, %c0_i32_163] : memref<8x8x128xf32, #tpu.memory_space<vmem>> -> memref<1x1x128xf32, #tpu.memory_space<vmem>>
      %312 = tpu.memref_squeeze %311 : memref<1x1x128xf32, #tpu.memory_space<vmem>> -> memref<128xf32, #tpu.memory_space<vmem>>
      %313 = tpu.memref_slice %arg10[%c1_i32_161] : memref<3x!tpu.dma_semaphore, #tpu.memory_space<semaphore_mem>> -> memref<1x!tpu.dma_semaphore, #tpu.memory_space<semaphore_mem>>
      %314 = tpu.memref_squeeze %313 : memref<1x!tpu.dma_semaphore, #tpu.memory_space<semaphore_mem>> -> memref<!tpu.dma_semaphore, #tpu.memory_space<semaphore_mem>>
      tpu.enqueue_dma source(%310 : memref<128xf32, #tpu.memory_space<any>>) target(%312 : memref<128xf32, #tpu.memory_space<vmem>>) target_semaphore(%314 : memref<!tpu.dma_semaphore, #tpu.memory_space<semaphore_mem>>)
      %c8_i32_164 = arith.constant 8 : i32
      %315 = arith.muli %236, %c8_i32_164 : i32
      %c7_i32 = arith.constant 7 : i32
      %316 = arith.addi %315, %c7_i32 : i32
      %317 = arith.index_cast %316 : i32 to index
      %318 = memref.load %arg1[%317] : memref<128xi32, #tpu.memory_space<smem>>
      %c7_i32_165 = arith.constant 7 : i32
      %c1_i32_166 = arith.constant 1 : i32
      %c0_i32_167 = arith.constant 0 : i32
      %319 = tpu.memref_slice %arg4[%318, %c0_i32_167] : memref<64x128xf32, #tpu.memory_space<any>> -> memref<1x128xf32, #tpu.memory_space<any>>
      %320 = tpu.memref_squeeze %319 : memref<1x128xf32, #tpu.memory_space<any>> -> memref<128xf32, #tpu.memory_space<any>>
      %c0_i32_168 = arith.constant 0 : i32
      %321 = tpu.memref_slice %arg7[%235, %c7_i32_165, %c0_i32_168] : memref<8x8x128xf32, #tpu.memory_space<vmem>> -> memref<1x1x128xf32, #tpu.memory_space<vmem>>
      %322 = tpu.memref_squeeze %321 : memref<1x1x128xf32, #tpu.memory_space<vmem>> -> memref<128xf32, #tpu.memory_space<vmem>>
      %323 = tpu.memref_slice %arg10[%c1_i32_166] : memref<3x!tpu.dma_semaphore, #tpu.memory_space<semaphore_mem>> -> memref<1x!tpu.dma_semaphore, #tpu.memory_space<semaphore_mem>>
      %324 = tpu.memref_squeeze %323 : memref<1x!tpu.dma_semaphore, #tpu.memory_space<semaphore_mem>> -> memref<!tpu.dma_semaphore, #tpu.memory_space<semaphore_mem>>
      tpu.enqueue_dma source(%320 : memref<128xf32, #tpu.memory_space<any>>) target(%322 : memref<128xf32, #tpu.memory_space<vmem>>) target_semaphore(%324 : memref<!tpu.dma_semaphore, #tpu.memory_space<semaphore_mem>>)
    }
    %c8_i32_1 = arith.constant 8 : i32
    %c0_i32_2 = arith.constant 0 : i32
    %c8_i32_3 = arith.constant 8 : i32
    %2 = arith.addi %c0_i32_2, %c8_i32_3 : i32
    %c1_i32_4 = arith.constant 1 : i32
    scf.for %arg11 = %c0_i32_2 to %2 step %c1_i32_4  : i32 {
      %c1_i32_121 = arith.constant 1 : i32
      %234 = arith.muli %arg11, %c1_i32_121 : i32
      %c0_i32_122 = arith.constant 0 : i32
      %235 = arith.addi %c0_i32_122, %234 : i32
      %236 = arith.addi %0, %235 : i32
      %c8_i32_123 = arith.constant 8 : i32
      %237 = arith.muli %236, %c8_i32_123 : i32
      %c0_i32_124 = arith.constant 0 : i32
      %238 = arith.addi %237, %c0_i32_124 : i32
      %239 = arith.index_cast %238 : i32 to index
      %240 = memref.load %arg3[%239] : memref<128xi32, #tpu.memory_space<smem>>
      %c0_i32_125 = arith.constant 0 : i32
      %c2_i32_126 = arith.constant 2 : i32
      %c0_i32_127 = arith.constant 0 : i32
      %241 = tpu.memref_slice %arg5[%240, %c0_i32_127] : memref<64x128xf32, #tpu.memory_space<any>> -> memref<1x128xf32, #tpu.memory_space<any>>
      %242 = tpu.memref_squeeze %241 : memref<1x128xf32, #tpu.memory_space<any>> -> memref<128xf32, #tpu.memory_space<any>>
      %c0_i32_128 = arith.constant 0 : i32
      %243 = tpu.memref_slice %arg9[%235, %c0_i32_125, %c0_i32_128] : memref<8x8x128xf32, #tpu.memory_space<vmem>> -> memref<1x1x128xf32, #tpu.memory_space<vmem>>
      %244 = tpu.memref_squeeze %243 : memref<1x1x128xf32, #tpu.memory_space<vmem>> -> memref<128xf32, #tpu.memory_space<vmem>>
      %245 = tpu.memref_slice %arg10[%c2_i32_126] : memref<3x!tpu.dma_semaphore, #tpu.memory_space<semaphore_mem>> -> memref<1x!tpu.dma_semaphore, #tpu.memory_space<semaphore_mem>>
      %246 = tpu.memref_squeeze %245 : memref<1x!tpu.dma_semaphore, #tpu.memory_space<semaphore_mem>> -> memref<!tpu.dma_semaphore, #tpu.memory_space<semaphore_mem>>
      tpu.enqueue_dma source(%242 : memref<128xf32, #tpu.memory_space<any>>) target(%244 : memref<128xf32, #tpu.memory_space<vmem>>) target_semaphore(%246 : memref<!tpu.dma_semaphore, #tpu.memory_space<semaphore_mem>>)
      %c8_i32_129 = arith.constant 8 : i32
      %247 = arith.muli %236, %c8_i32_129 : i32
      %c1_i32_130 = arith.constant 1 : i32
      %248 = arith.addi %247, %c1_i32_130 : i32
      %249 = arith.index_cast %248 : i32 to index
      %250 = memref.load %arg3[%249] : memref<128xi32, #tpu.memory_space<smem>>
      %c1_i32_131 = arith.constant 1 : i32
      %c2_i32_132 = arith.constant 2 : i32
      %c0_i32_133 = arith.constant 0 : i32
      %251 = tpu.memref_slice %arg5[%250, %c0_i32_133] : memref<64x128xf32, #tpu.memory_space<any>> -> memref<1x128xf32, #tpu.memory_space<any>>
      %252 = tpu.memref_squeeze %251 : memref<1x128xf32, #tpu.memory_space<any>> -> memref<128xf32, #tpu.memory_space<any>>
      %c0_i32_134 = arith.constant 0 : i32
      %253 = tpu.memref_slice %arg9[%235, %c1_i32_131, %c0_i32_134] : memref<8x8x128xf32, #tpu.memory_space<vmem>> -> memref<1x1x128xf32, #tpu.memory_space<vmem>>
      %254 = tpu.memref_squeeze %253 : memref<1x1x128xf32, #tpu.memory_space<vmem>> -> memref<128xf32, #tpu.memory_space<vmem>>
      %255 = tpu.memref_slice %arg10[%c2_i32_132] : memref<3x!tpu.dma_semaphore, #tpu.memory_space<semaphore_mem>> -> memref<1x!tpu.dma_semaphore, #tpu.memory_space<semaphore_mem>>
      %256 = tpu.memref_squeeze %255 : memref<1x!tpu.dma_semaphore, #tpu.memory_space<semaphore_mem>> -> memref<!tpu.dma_semaphore, #tpu.memory_space<semaphore_mem>>
      tpu.enqueue_dma source(%252 : memref<128xf32, #tpu.memory_space<any>>) target(%254 : memref<128xf32, #tpu.memory_space<vmem>>) target_semaphore(%256 : memref<!tpu.dma_semaphore, #tpu.memory_space<semaphore_mem>>)
      %c8_i32_135 = arith.constant 8 : i32
      %257 = arith.muli %236, %c8_i32_135 : i32
      %c2_i32_136 = arith.constant 2 : i32
      %258 = arith.addi %257, %c2_i32_136 : i32
      %259 = arith.index_cast %258 : i32 to index
      %260 = memref.load %arg3[%259] : memref<128xi32, #tpu.memory_space<smem>>
      %c2_i32_137 = arith.constant 2 : i32
      %c2_i32_138 = arith.constant 2 : i32
      %c0_i32_139 = arith.constant 0 : i32
      %261 = tpu.memref_slice %arg5[%260, %c0_i32_139] : memref<64x128xf32, #tpu.memory_space<any>> -> memref<1x128xf32, #tpu.memory_space<any>>
      %262 = tpu.memref_squeeze %261 : memref<1x128xf32, #tpu.memory_space<any>> -> memref<128xf32, #tpu.memory_space<any>>
      %c0_i32_140 = arith.constant 0 : i32
      %263 = tpu.memref_slice %arg9[%235, %c2_i32_137, %c0_i32_140] : memref<8x8x128xf32, #tpu.memory_space<vmem>> -> memref<1x1x128xf32, #tpu.memory_space<vmem>>
      %264 = tpu.memref_squeeze %263 : memref<1x1x128xf32, #tpu.memory_space<vmem>> -> memref<128xf32, #tpu.memory_space<vmem>>
      %265 = tpu.memref_slice %arg10[%c2_i32_138] : memref<3x!tpu.dma_semaphore, #tpu.memory_space<semaphore_mem>> -> memref<1x!tpu.dma_semaphore, #tpu.memory_space<semaphore_mem>>
      %266 = tpu.memref_squeeze %265 : memref<1x!tpu.dma_semaphore, #tpu.memory_space<semaphore_mem>> -> memref<!tpu.dma_semaphore, #tpu.memory_space<semaphore_mem>>
      tpu.enqueue_dma source(%262 : memref<128xf32, #tpu.memory_space<any>>) target(%264 : memref<128xf32, #tpu.memory_space<vmem>>) target_semaphore(%266 : memref<!tpu.dma_semaphore, #tpu.memory_space<semaphore_mem>>)
      %c8_i32_141 = arith.constant 8 : i32
      %267 = arith.muli %236, %c8_i32_141 : i32
      %c3_i32 = arith.constant 3 : i32
      %268 = arith.addi %267, %c3_i32 : i32
      %269 = arith.index_cast %268 : i32 to index
      %270 = memref.load %arg3[%269] : memref<128xi32, #tpu.memory_space<smem>>
      %c3_i32_142 = arith.constant 3 : i32
      %c2_i32_143 = arith.constant 2 : i32
      %c0_i32_144 = arith.constant 0 : i32
      %271 = tpu.memref_slice %arg5[%270, %c0_i32_144] : memref<64x128xf32, #tpu.memory_space<any>> -> memref<1x128xf32, #tpu.memory_space<any>>
      %272 = tpu.memref_squeeze %271 : memref<1x128xf32, #tpu.memory_space<any>> -> memref<128xf32, #tpu.memory_space<any>>
      %c0_i32_145 = arith.constant 0 : i32
      %273 = tpu.memref_slice %arg9[%235, %c3_i32_142, %c0_i32_145] : memref<8x8x128xf32, #tpu.memory_space<vmem>> -> memref<1x1x128xf32, #tpu.memory_space<vmem>>
      %274 = tpu.memref_squeeze %273 : memref<1x1x128xf32, #tpu.memory_space<vmem>> -> memref<128xf32, #tpu.memory_space<vmem>>
      %275 = tpu.memref_slice %arg10[%c2_i32_143] : memref<3x!tpu.dma_semaphore, #tpu.memory_space<semaphore_mem>> -> memref<1x!tpu.dma_semaphore, #tpu.memory_space<semaphore_mem>>
      %276 = tpu.memref_squeeze %275 : memref<1x!tpu.dma_semaphore, #tpu.memory_space<semaphore_mem>> -> memref<!tpu.dma_semaphore, #tpu.memory_space<semaphore_mem>>
      tpu.enqueue_dma source(%272 : memref<128xf32, #tpu.memory_space<any>>) target(%274 : memref<128xf32, #tpu.memory_space<vmem>>) target_semaphore(%276 : memref<!tpu.dma_semaphore, #tpu.memory_space<semaphore_mem>>)
      %c8_i32_146 = arith.constant 8 : i32
      %277 = arith.muli %236, %c8_i32_146 : i32
      %c4_i32 = arith.constant 4 : i32
      %278 = arith.addi %277, %c4_i32 : i32
      %279 = arith.index_cast %278 : i32 to index
      %280 = memref.load %arg3[%279] : memref<128xi32, #tpu.memory_space<smem>>
      %c4_i32_147 = arith.constant 4 : i32
      %c2_i32_148 = arith.constant 2 : i32
      %c0_i32_149 = arith.constant 0 : i32
      %281 = tpu.memref_slice %arg5[%280, %c0_i32_149] : memref<64x128xf32, #tpu.memory_space<any>> -> memref<1x128xf32, #tpu.memory_space<any>>
      %282 = tpu.memref_squeeze %281 : memref<1x128xf32, #tpu.memory_space<any>> -> memref<128xf32, #tpu.memory_space<any>>
      %c0_i32_150 = arith.constant 0 : i32
      %283 = tpu.memref_slice %arg9[%235, %c4_i32_147, %c0_i32_150] : memref<8x8x128xf32, #tpu.memory_space<vmem>> -> memref<1x1x128xf32, #tpu.memory_space<vmem>>
      %284 = tpu.memref_squeeze %283 : memref<1x1x128xf32, #tpu.memory_space<vmem>> -> memref<128xf32, #tpu.memory_space<vmem>>
      %285 = tpu.memref_slice %arg10[%c2_i32_148] : memref<3x!tpu.dma_semaphore, #tpu.memory_space<semaphore_mem>> -> memref<1x!tpu.dma_semaphore, #tpu.memory_space<semaphore_mem>>
      %286 = tpu.memref_squeeze %285 : memref<1x!tpu.dma_semaphore, #tpu.memory_space<semaphore_mem>> -> memref<!tpu.dma_semaphore, #tpu.memory_space<semaphore_mem>>
      tpu.enqueue_dma source(%282 : memref<128xf32, #tpu.memory_space<any>>) target(%284 : memref<128xf32, #tpu.memory_space<vmem>>) target_semaphore(%286 : memref<!tpu.dma_semaphore, #tpu.memory_space<semaphore_mem>>)
      %c8_i32_151 = arith.constant 8 : i32
      %287 = arith.muli %236, %c8_i32_151 : i32
      %c5_i32 = arith.constant 5 : i32
      %288 = arith.addi %287, %c5_i32 : i32
      %289 = arith.index_cast %288 : i32 to index
      %290 = memref.load %arg3[%289] : memref<128xi32, #tpu.memory_space<smem>>
      %c5_i32_152 = arith.constant 5 : i32
      %c2_i32_153 = arith.constant 2 : i32
      %c0_i32_154 = arith.constant 0 : i32
      %291 = tpu.memref_slice %arg5[%290, %c0_i32_154] : memref<64x128xf32, #tpu.memory_space<any>> -> memref<1x128xf32, #tpu.memory_space<any>>
      %292 = tpu.memref_squeeze %291 : memref<1x128xf32, #tpu.memory_space<any>> -> memref<128xf32, #tpu.memory_space<any>>
      %c0_i32_155 = arith.constant 0 : i32
      %293 = tpu.memref_slice %arg9[%235, %c5_i32_152, %c0_i32_155] : memref<8x8x128xf32, #tpu.memory_space<vmem>> -> memref<1x1x128xf32, #tpu.memory_space<vmem>>
      %294 = tpu.memref_squeeze %293 : memref<1x1x128xf32, #tpu.memory_space<vmem>> -> memref<128xf32, #tpu.memory_space<vmem>>
      %295 = tpu.memref_slice %arg10[%c2_i32_153] : memref<3x!tpu.dma_semaphore, #tpu.memory_space<semaphore_mem>> -> memref<1x!tpu.dma_semaphore, #tpu.memory_space<semaphore_mem>>
      %296 = tpu.memref_squeeze %295 : memref<1x!tpu.dma_semaphore, #tpu.memory_space<semaphore_mem>> -> memref<!tpu.dma_semaphore, #tpu.memory_space<semaphore_mem>>
      tpu.enqueue_dma source(%292 : memref<128xf32, #tpu.memory_space<any>>) target(%294 : memref<128xf32, #tpu.memory_space<vmem>>) target_semaphore(%296 : memref<!tpu.dma_semaphore, #tpu.memory_space<semaphore_mem>>)
      %c8_i32_156 = arith.constant 8 : i32
      %297 = arith.muli %236, %c8_i32_156 : i32
      %c6_i32 = arith.constant 6 : i32
      %298 = arith.addi %297, %c6_i32 : i32
      %299 = arith.index_cast %298 : i32 to index
      %300 = memref.load %arg3[%299] : memref<128xi32, #tpu.memory_space<smem>>
      %c6_i32_157 = arith.constant 6 : i32
      %c2_i32_158 = arith.constant 2 : i32
      %c0_i32_159 = arith.constant 0 : i32
      %301 = tpu.memref_slice %arg5[%300, %c0_i32_159] : memref<64x128xf32, #tpu.memory_space<any>> -> memref<1x128xf32, #tpu.memory_space<any>>
      %302 = tpu.memref_squeeze %301 : memref<1x128xf32, #tpu.memory_space<any>> -> memref<128xf32, #tpu.memory_space<any>>
      %c0_i32_160 = arith.constant 0 : i32
      %303 = tpu.memref_slice %arg9[%235, %c6_i32_157, %c0_i32_160] : memref<8x8x128xf32, #tpu.memory_space<vmem>> -> memref<1x1x128xf32, #tpu.memory_space<vmem>>
      %304 = tpu.memref_squeeze %303 : memref<1x1x128xf32, #tpu.memory_space<vmem>> -> memref<128xf32, #tpu.memory_space<vmem>>
      %305 = tpu.memref_slice %arg10[%c2_i32_158] : memref<3x!tpu.dma_semaphore, #tpu.memory_space<semaphore_mem>> -> memref<1x!tpu.dma_semaphore, #tpu.memory_space<semaphore_mem>>
      %306 = tpu.memref_squeeze %305 : memref<1x!tpu.dma_semaphore, #tpu.memory_space<semaphore_mem>> -> memref<!tpu.dma_semaphore, #tpu.memory_space<semaphore_mem>>
      tpu.enqueue_dma source(%302 : memref<128xf32, #tpu.memory_space<any>>) target(%304 : memref<128xf32, #tpu.memory_space<vmem>>) target_semaphore(%306 : memref<!tpu.dma_semaphore, #tpu.memory_space<semaphore_mem>>)
      %c8_i32_161 = arith.constant 8 : i32
      %307 = arith.muli %236, %c8_i32_161 : i32
      %c7_i32 = arith.constant 7 : i32
      %308 = arith.addi %307, %c7_i32 : i32
      %309 = arith.index_cast %308 : i32 to index
      %310 = memref.load %arg3[%309] : memref<128xi32, #tpu.memory_space<smem>>
      %c7_i32_162 = arith.constant 7 : i32
      %c2_i32_163 = arith.constant 2 : i32
      %c0_i32_164 = arith.constant 0 : i32
      %311 = tpu.memref_slice %arg5[%310, %c0_i32_164] : memref<64x128xf32, #tpu.memory_space<any>> -> memref<1x128xf32, #tpu.memory_space<any>>
      %312 = tpu.memref_squeeze %311 : memref<1x128xf32, #tpu.memory_space<any>> -> memref<128xf32, #tpu.memory_space<any>>
      %c0_i32_165 = arith.constant 0 : i32
      %313 = tpu.memref_slice %arg9[%235, %c7_i32_162, %c0_i32_165] : memref<8x8x128xf32, #tpu.memory_space<vmem>> -> memref<1x1x128xf32, #tpu.memory_space<vmem>>
      %314 = tpu.memref_squeeze %313 : memref<1x1x128xf32, #tpu.memory_space<vmem>> -> memref<128xf32, #tpu.memory_space<vmem>>
      %315 = tpu.memref_slice %arg10[%c2_i32_163] : memref<3x!tpu.dma_semaphore, #tpu.memory_space<semaphore_mem>> -> memref<1x!tpu.dma_semaphore, #tpu.memory_space<semaphore_mem>>
      %316 = tpu.memref_squeeze %315 : memref<1x!tpu.dma_semaphore, #tpu.memory_space<semaphore_mem>> -> memref<!tpu.dma_semaphore, #tpu.memory_space<semaphore_mem>>
      tpu.enqueue_dma source(%312 : memref<128xf32, #tpu.memory_space<any>>) target(%314 : memref<128xf32, #tpu.memory_space<vmem>>) target_semaphore(%316 : memref<!tpu.dma_semaphore, #tpu.memory_space<semaphore_mem>>)
    }
    %c8_i32_5 = arith.constant 8 : i32
    %c0_i32_6 = arith.constant 0 : i32
    %3 = tpu.memref_slice %arg10[%c0_i32_6] : memref<3x!tpu.dma_semaphore, #tpu.memory_space<semaphore_mem>> -> memref<1x!tpu.dma_semaphore, #tpu.memory_space<semaphore_mem>>
    %4 = tpu.memref_squeeze %3 : memref<1x!tpu.dma_semaphore, #tpu.memory_space<semaphore_mem>> -> memref<!tpu.dma_semaphore, #tpu.memory_space<semaphore_mem>>
    tpu.wait_dma2 semaphore(%4 : memref<!tpu.dma_semaphore, #tpu.memory_space<semaphore_mem>>) src(%arg8 : memref<8x128xf32, #tpu.memory_space<vmem>>) dst(%arg8 : memref<8x128xf32, #tpu.memory_space<vmem>>)
    %c1_i32_7 = arith.constant 1 : i32
    %5 = tpu.memref_slice %arg10[%c1_i32_7] : memref<3x!tpu.dma_semaphore, #tpu.memory_space<semaphore_mem>> -> memref<1x!tpu.dma_semaphore, #tpu.memory_space<semaphore_mem>>
    %6 = tpu.memref_squeeze %5 : memref<1x!tpu.dma_semaphore, #tpu.memory_space<semaphore_mem>> -> memref<!tpu.dma_semaphore, #tpu.memory_space<semaphore_mem>>
    tpu.wait_dma2 semaphore(%6 : memref<!tpu.dma_semaphore, #tpu.memory_space<semaphore_mem>>) src(%arg7 : memref<8x8x128xf32, #tpu.memory_space<vmem>>) dst(%arg7 : memref<8x8x128xf32, #tpu.memory_space<vmem>>)
    %c0 = arith.constant 0 : index
    %c0_8 = arith.constant 0 : index
    %7 = vector.load %arg8[%c0, %c0_8] : memref<8x128xf32, #tpu.memory_space<vmem>>, vector<8x128xf32>
    %cst = arith.constant 0.000000e+00 : f32
    %8 = vector.broadcast %cst : f32 to vector<8x128xf32>
    %c0_9 = arith.constant 0 : index
    %c0_10 = arith.constant 0 : index
    %c0_11 = arith.constant 0 : index
    %9 = vector.load %arg7[%c0_9, %c0_10, %c0_11] : memref<8x8x128xf32, #tpu.memory_space<vmem>>, vector<8x1x128xf32>
    %10 = vector.shape_cast %9 : vector<8x1x128xf32> to vector<8x128xf32>
    %11 = arith.addf %8, %10 : vector<8x128xf32>
    %c0_12 = arith.constant 0 : index
    %c1 = arith.constant 1 : index
    %c0_13 = arith.constant 0 : index
    %12 = vector.load %arg7[%c0_12, %c1, %c0_13] : memref<8x8x128xf32, #tpu.memory_space<vmem>>, vector<8x1x128xf32>
    %13 = vector.shape_cast %12 : vector<8x1x128xf32> to vector<8x128xf32>
    %14 = arith.addf %11, %13 : vector<8x128xf32>
    %c0_14 = arith.constant 0 : index
    %c2 = arith.constant 2 : index
    %c0_15 = arith.constant 0 : index
    %15 = vector.load %arg7[%c0_14, %c2, %c0_15] : memref<8x8x128xf32, #tpu.memory_space<vmem>>, vector<8x1x128xf32>
    %16 = vector.shape_cast %15 : vector<8x1x128xf32> to vector<8x128xf32>
    %17 = arith.addf %14, %16 : vector<8x128xf32>
    %c0_16 = arith.constant 0 : index
    %c3 = arith.constant 3 : index
    %c0_17 = arith.constant 0 : index
    %18 = vector.load %arg7[%c0_16, %c3, %c0_17] : memref<8x8x128xf32, #tpu.memory_space<vmem>>, vector<8x1x128xf32>
    %19 = vector.shape_cast %18 : vector<8x1x128xf32> to vector<8x128xf32>
    %20 = arith.addf %17, %19 : vector<8x128xf32>
    %c0_18 = arith.constant 0 : index
    %c4 = arith.constant 4 : index
    %c0_19 = arith.constant 0 : index
    %21 = vector.load %arg7[%c0_18, %c4, %c0_19] : memref<8x8x128xf32, #tpu.memory_space<vmem>>, vector<8x1x128xf32>
    %22 = vector.shape_cast %21 : vector<8x1x128xf32> to vector<8x128xf32>
    %23 = arith.addf %20, %22 : vector<8x128xf32>
    %c0_20 = arith.constant 0 : index
    %c5 = arith.constant 5 : index
    %c0_21 = arith.constant 0 : index
    %24 = vector.load %arg7[%c0_20, %c5, %c0_21] : memref<8x8x128xf32, #tpu.memory_space<vmem>>, vector<8x1x128xf32>
    %25 = vector.shape_cast %24 : vector<8x1x128xf32> to vector<8x128xf32>
    %26 = arith.addf %23, %25 : vector<8x128xf32>
    %c0_22 = arith.constant 0 : index
    %c6 = arith.constant 6 : index
    %c0_23 = arith.constant 0 : index
    %27 = vector.load %arg7[%c0_22, %c6, %c0_23] : memref<8x8x128xf32, #tpu.memory_space<vmem>>, vector<8x1x128xf32>
    %28 = vector.shape_cast %27 : vector<8x1x128xf32> to vector<8x128xf32>
    %29 = arith.addf %26, %28 : vector<8x128xf32>
    %c0_24 = arith.constant 0 : index
    %c7 = arith.constant 7 : index
    %c0_25 = arith.constant 0 : index
    %30 = vector.load %arg7[%c0_24, %c7, %c0_25] : memref<8x8x128xf32, #tpu.memory_space<vmem>>, vector<8x1x128xf32>
    %31 = vector.shape_cast %30 : vector<8x1x128xf32> to vector<8x128xf32>
    %32 = arith.addf %29, %31 : vector<8x128xf32>
    %33 = tpu.iota {dimensions = array<i32: 1>} : vector<8x128xi32>
    %cst_26 = arith.constant 0.000000e+00 : f32
    %34 = vector.broadcast %cst_26 : f32 to vector<8x1xf32>
    %35 = arith.mulf %32, %7 : vector<8x128xf32>
    %cst_27 = arith.constant -1.000000e+01 : f32
    %cst_28 = arith.constant 1.000000e+01 : f32
    %36 = vector.broadcast %cst_27 : f32 to vector<8x128xf32>
    %37 = arith.maximumf %36, %35 : vector<8x128xf32>
    %38 = vector.broadcast %cst_28 : f32 to vector<8x128xf32>
    %39 = arith.minimumf %38, %37 : vector<8x128xf32>
    %c1_i32_29 = arith.constant 1 : i32
    %40 = vector.broadcast %c1_i32_29 : i32 to vector<8x128xi32>
    %41 = arith.muli %33, %40 : vector<8x128xi32>
    %c0_i32_30 = arith.constant 0 : i32
    %42 = vector.broadcast %c0_i32_30 : i32 to vector<8x128xi32>
    %43 = arith.addi %41, %42 : vector<8x128xi32>
    %c32_i32 = arith.constant 32 : i32
    %44 = vector.broadcast %c32_i32 : i32 to vector<8x128xi32>
    %45 = arith.cmpi slt, %43, %44 : vector<8x128xi32>
    %cst_31 = arith.constant 0.000000e+00 : f32
    %46 = vector.broadcast %cst_31 : f32 to vector<8x128xf32>
    %47 = arith.subf %46, %39 : vector<8x128xf32>
    %48 = math.exp %47 : vector<8x128xf32>
    %49 = math.log1p %48 : vector<8x128xf32>
    %cst_32 = arith.constant 0.000000e+00 : f32
    %50 = vector.broadcast %cst_32 : f32 to vector<8x128xf32>
    %51 = arith.subf %50, %49 : vector<8x128xf32>
    %cst_33 = arith.constant 0.000000e+00 : f32
    %52 = vector.broadcast %cst_33 : f32 to vector<8x128xf32>
    %53 = arith.select %45, %51, %52 : vector<8x128xi1>, vector<8x128xf32>
    %cst_34 = arith.constant dense<0.000000e+00> : vector<8xf32>
    %54 = vector.multi_reduction <add>, %53, %cst_34 [1] : vector<8x128xf32> to vector<8xf32>
    %55 = vector.shape_cast %54 : vector<8xf32> to vector<8x1xf32>
    %56 = arith.addf %34, %55 : vector<8x1xf32>
    %c2_i32 = arith.constant 2 : i32
    %57 = tpu.memref_slice %arg10[%c2_i32] : memref<3x!tpu.dma_semaphore, #tpu.memory_space<semaphore_mem>> -> memref<1x!tpu.dma_semaphore, #tpu.memory_space<semaphore_mem>>
    %58 = tpu.memref_squeeze %57 : memref<1x!tpu.dma_semaphore, #tpu.memory_space<semaphore_mem>> -> memref<!tpu.dma_semaphore, #tpu.memory_space<semaphore_mem>>
    tpu.wait_dma2 semaphore(%58 : memref<!tpu.dma_semaphore, #tpu.memory_space<semaphore_mem>>) src(%arg9 : memref<8x8x128xf32, #tpu.memory_space<vmem>>) dst(%arg9 : memref<8x8x128xf32, #tpu.memory_space<vmem>>)
    %cst_35 = arith.constant 0.000000e+00 : f32
    %59 = vector.broadcast %cst_35 : f32 to vector<8x1xf32>
    %c0_36 = arith.constant 0 : index
    %c0_37 = arith.constant 0 : index
    %c0_38 = arith.constant 0 : index
    %60 = vector.load %arg9[%c0_36, %c0_37, %c0_38] : memref<8x8x128xf32, #tpu.memory_space<vmem>>, vector<8x1x128xf32>
    %61 = vector.shape_cast %60 : vector<8x1x128xf32> to vector<8x128xf32>
    %cst_39 = arith.constant 0.000000e+00 : f32
    %62 = vector.broadcast %cst_39 : f32 to vector<8x1xf32>
    %63 = arith.mulf %61, %7 : vector<8x128xf32>
    %cst_40 = arith.constant dense<0.000000e+00> : vector<8xf32>
    %64 = vector.multi_reduction <add>, %63, %cst_40 [1] : vector<8x128xf32> to vector<8xf32>
    %65 = vector.shape_cast %64 : vector<8xf32> to vector<8x1xf32>
    %66 = arith.addf %62, %65 : vector<8x1xf32>
    %cst_41 = arith.constant -1.000000e+01 : f32
    %cst_42 = arith.constant 1.000000e+01 : f32
    %67 = vector.broadcast %cst_41 : f32 to vector<8x1xf32>
    %68 = arith.maximumf %67, %66 : vector<8x1xf32>
    %69 = vector.broadcast %cst_42 : f32 to vector<8x1xf32>
    %70 = arith.minimumf %69, %68 : vector<8x1xf32>
    %cst_43 = arith.constant 0.000000e+00 : f32
    %71 = vector.broadcast %cst_43 : f32 to vector<8x1xf32>
    %72 = arith.subf %71, %70 : vector<8x1xf32>
    %cst_44 = arith.constant 0.000000e+00 : f32
    %73 = vector.broadcast %cst_44 : f32 to vector<8x1xf32>
    %74 = arith.subf %73, %72 : vector<8x1xf32>
    %75 = math.exp %74 : vector<8x1xf32>
    %76 = math.log1p %75 : vector<8x1xf32>
    %cst_45 = arith.constant 0.000000e+00 : f32
    %77 = vector.broadcast %cst_45 : f32 to vector<8x1xf32>
    %78 = arith.subf %77, %76 : vector<8x1xf32>
    %79 = arith.addf %59, %78 : vector<8x1xf32>
    %c0_46 = arith.constant 0 : index
    %c1_47 = arith.constant 1 : index
    %c0_48 = arith.constant 0 : index
    %80 = vector.load %arg9[%c0_46, %c1_47, %c0_48] : memref<8x8x128xf32, #tpu.memory_space<vmem>>, vector<8x1x128xf32>
    %81 = vector.shape_cast %80 : vector<8x1x128xf32> to vector<8x128xf32>
    %cst_49 = arith.constant 0.000000e+00 : f32
    %82 = vector.broadcast %cst_49 : f32 to vector<8x1xf32>
    %83 = arith.mulf %81, %7 : vector<8x128xf32>
    %cst_50 = arith.constant dense<0.000000e+00> : vector<8xf32>
    %84 = vector.multi_reduction <add>, %83, %cst_50 [1] : vector<8x128xf32> to vector<8xf32>
    %85 = vector.shape_cast %84 : vector<8xf32> to vector<8x1xf32>
    %86 = arith.addf %82, %85 : vector<8x1xf32>
    %cst_51 = arith.constant -1.000000e+01 : f32
    %cst_52 = arith.constant 1.000000e+01 : f32
    %87 = vector.broadcast %cst_51 : f32 to vector<8x1xf32>
    %88 = arith.maximumf %87, %86 : vector<8x1xf32>
    %89 = vector.broadcast %cst_52 : f32 to vector<8x1xf32>
    %90 = arith.minimumf %89, %88 : vector<8x1xf32>
    %cst_53 = arith.constant 0.000000e+00 : f32
    %91 = vector.broadcast %cst_53 : f32 to vector<8x1xf32>
    %92 = arith.subf %91, %90 : vector<8x1xf32>
    %cst_54 = arith.constant 0.000000e+00 : f32
    %93 = vector.broadcast %cst_54 : f32 to vector<8x1xf32>
    %94 = arith.subf %93, %92 : vector<8x1xf32>
    %95 = math.exp %94 : vector<8x1xf32>
    %96 = math.log1p %95 : vector<8x1xf32>
    %cst_55 = arith.constant 0.000000e+00 : f32
    %97 = vector.broadcast %cst_55 : f32 to vector<8x1xf32>
    %98 = arith.subf %97, %96 : vector<8x1xf32>
    %99 = arith.addf %79, %98 : vector<8x1xf32>
    %c0_56 = arith.constant 0 : index
    %c2_57 = arith.constant 2 : index
    %c0_58 = arith.constant 0 : index
    %100 = vector.load %arg9[%c0_56, %c2_57, %c0_58] : memref<8x8x128xf32, #tpu.memory_space<vmem>>, vector<8x1x128xf32>
    %101 = vector.shape_cast %100 : vector<8x1x128xf32> to vector<8x128xf32>
    %cst_59 = arith.constant 0.000000e+00 : f32
    %102 = vector.broadcast %cst_59 : f32 to vector<8x1xf32>
    %103 = arith.mulf %101, %7 : vector<8x128xf32>
    %cst_60 = arith.constant dense<0.000000e+00> : vector<8xf32>
    %104 = vector.multi_reduction <add>, %103, %cst_60 [1] : vector<8x128xf32> to vector<8xf32>
    %105 = vector.shape_cast %104 : vector<8xf32> to vector<8x1xf32>
    %106 = arith.addf %102, %105 : vector<8x1xf32>
    %cst_61 = arith.constant -1.000000e+01 : f32
    %cst_62 = arith.constant 1.000000e+01 : f32
    %107 = vector.broadcast %cst_61 : f32 to vector<8x1xf32>
    %108 = arith.maximumf %107, %106 : vector<8x1xf32>
    %109 = vector.broadcast %cst_62 : f32 to vector<8x1xf32>
    %110 = arith.minimumf %109, %108 : vector<8x1xf32>
    %cst_63 = arith.constant 0.000000e+00 : f32
    %111 = vector.broadcast %cst_63 : f32 to vector<8x1xf32>
    %112 = arith.subf %111, %110 : vector<8x1xf32>
    %cst_64 = arith.constant 0.000000e+00 : f32
    %113 = vector.broadcast %cst_64 : f32 to vector<8x1xf32>
    %114 = arith.subf %113, %112 : vector<8x1xf32>
    %115 = math.exp %114 : vector<8x1xf32>
    %116 = math.log1p %115 : vector<8x1xf32>
    %cst_65 = arith.constant 0.000000e+00 : f32
    %117 = vector.broadcast %cst_65 : f32 to vector<8x1xf32>
    %118 = arith.subf %117, %116 : vector<8x1xf32>
    %119 = arith.addf %99, %118 : vector<8x1xf32>
    %c0_66 = arith.constant 0 : index
    %c3_67 = arith.constant 3 : index
    %c0_68 = arith.constant 0 : index
    %120 = vector.load %arg9[%c0_66, %c3_67, %c0_68] : memref<8x8x128xf32, #tpu.memory_space<vmem>>, vector<8x1x128xf32>
    %121 = vector.shape_cast %120 : vector<8x1x128xf32> to vector<8x128xf32>
    %cst_69 = arith.constant 0.000000e+00 : f32
    %122 = vector.broadcast %cst_69 : f32 to vector<8x1xf32>
    %123 = arith.mulf %121, %7 : vector<8x128xf32>
    %cst_70 = arith.constant dense<0.000000e+00> : vector<8xf32>
    %124 = vector.multi_reduction <add>, %123, %cst_70 [1] : vector<8x128xf32> to vector<8xf32>
    %125 = vector.shape_cast %124 : vector<8xf32> to vector<8x1xf32>
    %126 = arith.addf %122, %125 : vector<8x1xf32>
    %cst_71 = arith.constant -1.000000e+01 : f32
    %cst_72 = arith.constant 1.000000e+01 : f32
    %127 = vector.broadcast %cst_71 : f32 to vector<8x1xf32>
    %128 = arith.maximumf %127, %126 : vector<8x1xf32>
    %129 = vector.broadcast %cst_72 : f32 to vector<8x1xf32>
    %130 = arith.minimumf %129, %128 : vector<8x1xf32>
    %cst_73 = arith.constant 0.000000e+00 : f32
    %131 = vector.broadcast %cst_73 : f32 to vector<8x1xf32>
    %132 = arith.subf %131, %130 : vector<8x1xf32>
    %cst_74 = arith.constant 0.000000e+00 : f32
    %133 = vector.broadcast %cst_74 : f32 to vector<8x1xf32>
    %134 = arith.subf %133, %132 : vector<8x1xf32>
    %135 = math.exp %134 : vector<8x1xf32>
    %136 = math.log1p %135 : vector<8x1xf32>
    %cst_75 = arith.constant 0.000000e+00 : f32
    %137 = vector.broadcast %cst_75 : f32 to vector<8x1xf32>
    %138 = arith.subf %137, %136 : vector<8x1xf32>
    %139 = arith.addf %119, %138 : vector<8x1xf32>
    %c0_76 = arith.constant 0 : index
    %c4_77 = arith.constant 4 : index
    %c0_78 = arith.constant 0 : index
    %140 = vector.load %arg9[%c0_76, %c4_77, %c0_78] : memref<8x8x128xf32, #tpu.memory_space<vmem>>, vector<8x1x128xf32>
    %141 = vector.shape_cast %140 : vector<8x1x128xf32> to vector<8x128xf32>
    %cst_79 = arith.constant 0.000000e+00 : f32
    %142 = vector.broadcast %cst_79 : f32 to vector<8x1xf32>
    %143 = arith.mulf %141, %7 : vector<8x128xf32>
    %cst_80 = arith.constant dense<0.000000e+00> : vector<8xf32>
    %144 = vector.multi_reduction <add>, %143, %cst_80 [1] : vector<8x128xf32> to vector<8xf32>
    %145 = vector.shape_cast %144 : vector<8xf32> to vector<8x1xf32>
    %146 = arith.addf %142, %145 : vector<8x1xf32>
    %cst_81 = arith.constant -1.000000e+01 : f32
    %cst_82 = arith.constant 1.000000e+01 : f32
    %147 = vector.broadcast %cst_81 : f32 to vector<8x1xf32>
    %148 = arith.maximumf %147, %146 : vector<8x1xf32>
    %149 = vector.broadcast %cst_82 : f32 to vector<8x1xf32>
    %150 = arith.minimumf %149, %148 : vector<8x1xf32>
    %cst_83 = arith.constant 0.000000e+00 : f32
    %151 = vector.broadcast %cst_83 : f32 to vector<8x1xf32>
    %152 = arith.subf %151, %150 : vector<8x1xf32>
    %cst_84 = arith.constant 0.000000e+00 : f32
    %153 = vector.broadcast %cst_84 : f32 to vector<8x1xf32>
    %154 = arith.subf %153, %152 : vector<8x1xf32>
    %155 = math.exp %154 : vector<8x1xf32>
    %156 = math.log1p %155 : vector<8x1xf32>
    %cst_85 = arith.constant 0.000000e+00 : f32
    %157 = vector.broadcast %cst_85 : f32 to vector<8x1xf32>
    %158 = arith.subf %157, %156 : vector<8x1xf32>
    %159 = arith.addf %139, %158 : vector<8x1xf32>
    %c0_86 = arith.constant 0 : index
    %c5_87 = arith.constant 5 : index
    %c0_88 = arith.constant 0 : index
    %160 = vector.load %arg9[%c0_86, %c5_87, %c0_88] : memref<8x8x128xf32, #tpu.memory_space<vmem>>, vector<8x1x128xf32>
    %161 = vector.shape_cast %160 : vector<8x1x128xf32> to vector<8x128xf32>
    %cst_89 = arith.constant 0.000000e+00 : f32
    %162 = vector.broadcast %cst_89 : f32 to vector<8x1xf32>
    %163 = arith.mulf %161, %7 : vector<8x128xf32>
    %cst_90 = arith.constant dense<0.000000e+00> : vector<8xf32>
    %164 = vector.multi_reduction <add>, %163, %cst_90 [1] : vector<8x128xf32> to vector<8xf32>
    %165 = vector.shape_cast %164 : vector<8xf32> to vector<8x1xf32>
    %166 = arith.addf %162, %165 : vector<8x1xf32>
    %cst_91 = arith.constant -1.000000e+01 : f32
    %cst_92 = arith.constant 1.000000e+01 : f32
    %167 = vector.broadcast %cst_91 : f32 to vector<8x1xf32>
    %168 = arith.maximumf %167, %166 : vector<8x1xf32>
    %169 = vector.broadcast %cst_92 : f32 to vector<8x1xf32>
    %170 = arith.minimumf %169, %168 : vector<8x1xf32>
    %cst_93 = arith.constant 0.000000e+00 : f32
    %171 = vector.broadcast %cst_93 : f32 to vector<8x1xf32>
    %172 = arith.subf %171, %170 : vector<8x1xf32>
    %cst_94 = arith.constant 0.000000e+00 : f32
    %173 = vector.broadcast %cst_94 : f32 to vector<8x1xf32>
    %174 = arith.subf %173, %172 : vector<8x1xf32>
    %175 = math.exp %174 : vector<8x1xf32>
    %176 = math.log1p %175 : vector<8x1xf32>
    %cst_95 = arith.constant 0.000000e+00 : f32
    %177 = vector.broadcast %cst_95 : f32 to vector<8x1xf32>
    %178 = arith.subf %177, %176 : vector<8x1xf32>
    %179 = arith.addf %159, %178 : vector<8x1xf32>
    %c0_96 = arith.constant 0 : index
    %c6_97 = arith.constant 6 : index
    %c0_98 = arith.constant 0 : index
    %180 = vector.load %arg9[%c0_96, %c6_97, %c0_98] : memref<8x8x128xf32, #tpu.memory_space<vmem>>, vector<8x1x128xf32>
    %181 = vector.shape_cast %180 : vector<8x1x128xf32> to vector<8x128xf32>
    %cst_99 = arith.constant 0.000000e+00 : f32
    %182 = vector.broadcast %cst_99 : f32 to vector<8x1xf32>
    %183 = arith.mulf %181, %7 : vector<8x128xf32>
    %cst_100 = arith.constant dense<0.000000e+00> : vector<8xf32>
    %184 = vector.multi_reduction <add>, %183, %cst_100 [1] : vector<8x128xf32> to vector<8xf32>
    %185 = vector.shape_cast %184 : vector<8xf32> to vector<8x1xf32>
    %186 = arith.addf %182, %185 : vector<8x1xf32>
    %cst_101 = arith.constant -1.000000e+01 : f32
    %cst_102 = arith.constant 1.000000e+01 : f32
    %187 = vector.broadcast %cst_101 : f32 to vector<8x1xf32>
    %188 = arith.maximumf %187, %186 : vector<8x1xf32>
    %189 = vector.broadcast %cst_102 : f32 to vector<8x1xf32>
    %190 = arith.minimumf %189, %188 : vector<8x1xf32>
    %cst_103 = arith.constant 0.000000e+00 : f32
    %191 = vector.broadcast %cst_103 : f32 to vector<8x1xf32>
    %192 = arith.subf %191, %190 : vector<8x1xf32>
    %cst_104 = arith.constant 0.000000e+00 : f32
    %193 = vector.broadcast %cst_104 : f32 to vector<8x1xf32>
    %194 = arith.subf %193, %192 : vector<8x1xf32>
    %195 = math.exp %194 : vector<8x1xf32>
    %196 = math.log1p %195 : vector<8x1xf32>
    %cst_105 = arith.constant 0.000000e+00 : f32
    %197 = vector.broadcast %cst_105 : f32 to vector<8x1xf32>
    %198 = arith.subf %197, %196 : vector<8x1xf32>
    %199 = arith.addf %179, %198 : vector<8x1xf32>
    %c0_106 = arith.constant 0 : index
    %c7_107 = arith.constant 7 : index
    %c0_108 = arith.constant 0 : index
    %200 = vector.load %arg9[%c0_106, %c7_107, %c0_108] : memref<8x8x128xf32, #tpu.memory_space<vmem>>, vector<8x1x128xf32>
    %201 = vector.shape_cast %200 : vector<8x1x128xf32> to vector<8x128xf32>
    %cst_109 = arith.constant 0.000000e+00 : f32
    %202 = vector.broadcast %cst_109 : f32 to vector<8x1xf32>
    %203 = arith.mulf %201, %7 : vector<8x128xf32>
    %cst_110 = arith.constant dense<0.000000e+00> : vector<8xf32>
    %204 = vector.multi_reduction <add>, %203, %cst_110 [1] : vector<8x128xf32> to vector<8xf32>
    %205 = vector.shape_cast %204 : vector<8xf32> to vector<8x1xf32>
    %206 = arith.addf %202, %205 : vector<8x1xf32>
    %cst_111 = arith.constant -1.000000e+01 : f32
    %cst_112 = arith.constant 1.000000e+01 : f32
    %207 = vector.broadcast %cst_111 : f32 to vector<8x1xf32>
    %208 = arith.maximumf %207, %206 : vector<8x1xf32>
    %209 = vector.broadcast %cst_112 : f32 to vector<8x1xf32>
    %210 = arith.minimumf %209, %208 : vector<8x1xf32>
    %cst_113 = arith.constant 0.000000e+00 : f32
    %211 = vector.broadcast %cst_113 : f32 to vector<8x1xf32>
    %212 = arith.subf %211, %210 : vector<8x1xf32>
    %cst_114 = arith.constant 0.000000e+00 : f32
    %213 = vector.broadcast %cst_114 : f32 to vector<8x1xf32>
    %214 = arith.subf %213, %212 : vector<8x1xf32>
    %215 = math.exp %214 : vector<8x1xf32>
    %216 = math.log1p %215 : vector<8x1xf32>
    %cst_115 = arith.constant 0.000000e+00 : f32
    %217 = vector.broadcast %cst_115 : f32 to vector<8x1xf32>
    %218 = arith.subf %217, %216 : vector<8x1xf32>
    %219 = arith.addf %199, %218 : vector<8x1xf32>
    %220 = tpu.iota {dimensions = array<i32: 0>} : vector<8x1xi32>
    %221 = vector.broadcast %0 : i32 to vector<8x1xi32>
    %222 = arith.addi %221, %220 : vector<8x1xi32>
    %c14_i32 = arith.constant 14 : i32
    %223 = vector.broadcast %c14_i32 : i32 to vector<8x1xi32>
    %224 = arith.cmpi slt, %222, %223 : vector<8x1xi32>
    %225 = arith.addf %56, %219 : vector<8x1xf32>
    %cst_116 = arith.constant 0.000000e+00 : f32
    %226 = vector.broadcast %cst_116 : f32 to vector<8x1xf32>
    %227 = arith.select %224, %225, %226 : vector<8x1xi1>, vector<8x1xf32>
    %228 = vector.shape_cast %227 : vector<8x1xf32> to vector<1x8x1xf32>
    %cst_117 = arith.constant dense<0.000000e+00> : vector<1xf32>
    %229 = vector.multi_reduction <add>, %228, %cst_117 [1, 2] : vector<1x8x1xf32> to vector<1xf32>
    %230 = vector.shape_cast %229 : vector<1xf32> to vector<1x1x1xf32>
    %231 = vector.extract %230[0, 0, 0] : f32 from vector<1x1x1xf32>
    %232 = vector.broadcast %231 : f32 to vector<1x8x128xf32>
    %c0_118 = arith.constant 0 : index
    %c0_119 = arith.constant 0 : index
    %c0_120 = arith.constant 0 : index
    %233 = vector.load %arg6[%c0_118, %c0_119, %c0_120] : memref<1x8x128xf32, #tpu.memory_space<vmem>>, vector<1x8x128xf32>
    tpu.vector_store %arg6[%c0_118, %c0_119, %c0_120], %232 {strides = array<i32>} : memref<1x8x128xf32, #tpu.memory_space<vmem>>, vector<1x8x128xf32>,
    return
  }
  func.func @transform_2(%arg0: i32, %arg1: memref<128xi32, #tpu.memory_space<smem>>, %arg2: memref<16xi32, #tpu.memory_space<smem>>, %arg3: memref<128xi32, #tpu.memory_space<smem>>) -> (i32, i32, i32) {
    %c0_i32 = arith.constant 0 : i32
    %c0_i32_0 = arith.constant 0 : i32
    %c0_i32_1 = arith.constant 0 : i32
    return %arg0, %c0_i32, %c0_i32_0 : i32, i32, i32
  }
}

</mosaic_0001>

<llo_original>
// kernel: tpu_custom_call.1
$region0: #{tpu_custom_call.1}
  #allocation0 [shape = 'u32[]', space=smem, size = 0x4, offset = 0x4, fixed_abs, tag = 'smem constant byte address 0x4 - core index']
  #allocation1 [shape = 'u32[144,128]{1,0:T(1,128)}', space=vmem, size = 0x12000, scoped, tag = 'internal scratch']
  #allocation2 [shape = 'f32[8,8,128]{2,1,0:T(8,128)}', space=vmem, size = 0x8000, scoped, tag = 'scratch operand']
  #allocation3 [shape = 'f32[8,128]{1,0:T(8,128)}', space=vmem, size = 0x1000, scoped, tag = 'scratch operand']
  #allocation4 [shape = 'f32[8,8,128]{2,1,0:T(8,128)}', space=vmem, size = 0x8000, scoped, tag = 'scratch operand']
  #allocation5 [shape = 's32[3]{0}', space=sflag, size = 0xc, scoped, tag = 'scratch operand']
  #allocation6 [shape = 's32[1]{0}', space=sflag, size = 0x4, scoped, tag = 'scoped memory for tpu_custom_call.1']
  #allocation7 [shape = 'u8[512]{0}', space=smem, size = 0x200, scoped, tag = 'prefetched SMEM operand 0']
  #allocation8 [shape = 'u8[512]{0}', space=smem, size = 0x200, scoped, tag = 'prefetched SMEM operand 1']
  #allocation9 [shape = 'u8[512]{0}', space=smem, size = 0x200, scoped, tag = 'prefetched SMEM operand 2']
  #allocation12 [shape = 's32[]', space=sflag, size = 0x4, offset = 0, fixed_abs, tag = 'sflag constant byte address 0x0 - dummy sync flag']
  #allocation13 [shape = 's32[]', space=sflag, size = 0x4, offset = 0, fixed_abs, tag = 'sflag constant byte address 0x0 - dummy sync flag']
  #allocation14 [shape = 'u32[]', space=smem, size = 0x4, offset = 0x44, fixed_abs, tag = 'smem constant byte address 0x44 - assertion arg 0']
  #allocation15 [shape = 'u32[]', space=smem, size = 0x4, offset = 0x48, fixed_abs, tag = 'smem constant byte address 0x48 - assertion arg 1']
  #allocation16 [shape = 's32[]', space=sflag, size = 0x4, offset = 0, fixed_abs, tag = 'sflag constant byte address 0x0 - dummy sync flag']
  #allocation17 [shape = 's32[]', space=sflag, size = 0x4, offset = 0, fixed_abs, tag = 'sflag constant byte address 0x0 - dummy sync flag']
  #allocation18 [shape = 's32[]', space=sflag, size = 0x4, offset = 0, fixed_abs, tag = 'sflag constant byte address 0x0 - dummy sync flag']
  #allocation19 [shape = 's32[]', space=sflag, size = 0x4, offset = 0, fixed_abs, tag = 'sflag constant byte address 0x0 - dummy sync flag']
  #allocation20 [shape = 's32[]', space=sflag, size = 0x4, offset = 0, fixed_abs, tag = 'sflag constant byte address 0x0 - dummy sync flag']
  #allocation21 [shape = 's32[]', space=sflag, size = 0x4, offset = 0, fixed_abs, tag = 'sflag constant byte address 0x0 - dummy sync flag']
  #allocation22 [shape = 's32[]', space=sflag, size = 0x4, offset = 0, fixed_abs, tag = 'sflag constant byte address 0x0 - dummy sync flag']
  #allocation23 [shape = 's32[]', space=sflag, size = 0x4, offset = 0, fixed_abs, tag = 'sflag constant byte address 0x0 - dummy sync flag']
  #allocation24 [shape = 's32[]', space=sflag, size = 0x4, offset = 0, fixed_abs, tag = 'sflag constant byte address 0x0 - dummy sync flag']
  #allocation25 [shape = 's32[]', space=sflag, size = 0x4, offset = 0, fixed_abs, tag = 'sflag constant byte address 0x0 - dummy sync flag']
  #allocation26 [shape = 's32[]', space=sflag, size = 0x4, offset = 0, fixed_abs, tag = 'sflag constant byte address 0x0 - dummy sync flag']
  #allocation27 [shape = 's32[]', space=sflag, size = 0x4, offset = 0, fixed_abs, tag = 'sflag constant byte address 0x0 - dummy sync flag']
  #allocation28 [shape = 's32[]', space=sflag, size = 0x4, offset = 0, fixed_abs, tag = 'sflag constant byte address 0x0 - dummy sync flag']
  #allocation29 [shape = 's32[]', space=sflag, size = 0x4, offset = 0, fixed_abs, tag = 'sflag constant byte address 0x0 - dummy sync flag']
  #allocation30 [shape = 's32[]', space=sflag, size = 0x4, offset = 0, fixed_abs, tag = 'sflag constant byte address 0x0 - dummy sync flag']
  #allocation31 [shape = 's32[]', space=sflag, size = 0x4, offset = 0, fixed_abs, tag = 'sflag constant byte address 0x0 - dummy sync flag']
  #allocation32 [shape = 's32[]', space=sflag, size = 0x4, offset = 0, fixed_abs, tag = 'sflag constant byte address 0x0 - dummy sync flag']
  #allocation33 [shape = 's32[]', space=sflag, size = 0x4, offset = 0, fixed_abs, tag = 'sflag constant byte address 0x0 - dummy sync flag']
  #allocation34 [shape = 's32[]', space=sflag, size = 0x4, offset = 0, fixed_abs, tag = 'sflag constant byte address 0x0 - dummy sync flag']
  #allocation35 [shape = 's32[]', space=sflag, size = 0x4, offset = 0, fixed_abs, tag = 'sflag constant byte address 0x0 - dummy sync flag']
  #allocation36 [shape = 's32[]', space=sflag, size = 0x4, offset = 0, fixed_abs, tag = 'sflag constant byte address 0x0 - dummy sync flag']
  #allocation37 [shape = 's32[]', space=sflag, size = 0x4, offset = 0, fixed_abs, tag = 'sflag constant byte address 0x0 - dummy sync flag']
  #allocation38 [shape = 's32[]', space=sflag, size = 0x4, offset = 0, fixed_abs, tag = 'sflag constant byte address 0x0 - dummy sync flag']
  #allocation39 [shape = 's32[]', space=sflag, size = 0x4, offset = 0, fixed_abs, tag = 'sflag constant byte address 0x0 - dummy sync flag']
  #allocation40 [shape = 's32[]', space=sflag, size = 0x4, offset = 0, fixed_abs, tag = 'sflag constant byte address 0x0 - dummy sync flag']
  #allocation41 [shape = 's32[]', space=sflag, size = 0x4, offset = 0, fixed_abs, tag = 'sflag constant byte address 0x0 - dummy sync flag']
  #allocation42 [shape = 's32[]', space=sflag, size = 0x4, offset = 0, fixed_abs, tag = 'sflag constant byte address 0x0 - dummy sync flag']
  #allocation43 [shape = 's32[]', space=sflag, size = 0x4, offset = 0, fixed_abs, tag = 'sflag constant byte address 0x0 - dummy sync flag']
  #allocation44 [shape = 's32[]', space=sflag, size = 0x4, offset = 0, fixed_abs, tag = 'sflag constant byte address 0x0 - dummy sync flag']
  #allocation45 [shape = 's32[]', space=sflag, size = 0x4, offset = 0, fixed_abs, tag = 'sflag constant byte address 0x0 - dummy sync flag']
  #allocation46 [shape = 's32[]', space=sflag, size = 0x4, offset = 0, fixed_abs, tag = 'sflag constant byte address 0x0 - dummy sync flag']
  #allocation47 [shape = 's32[]', space=sflag, size = 0x4, offset = 0, fixed_abs, tag = 'sflag constant byte address 0x0 - dummy sync flag']
  %s0 = inlined_call_operand.hbm [shape: s32[128], index: 0, kind: input, shape index: {}]
  %s1 = inlined_call_operand.vmem [shape: s32[16], index: 1, kind: input, shape index: {}]
  %s2 = inlined_call_operand.vmem [shape: s32[128], index: 2, kind: input, shape index: {}]
  %s3 = inlined_call_operand.hbm [shape: f32[64,128], index: 3, kind: input, shape index: {}]
  %s4 = inlined_call_operand.hbm [shape: f32[64,128], index: 4, kind: input, shape index: {}]
  %s5 = inlined_call_operand.hbm [shape: f32[2,8,128], index: 5, kind: output, shape index: {}]
  %s6 = sld [smem:[#allocation0]]
  $region107: #{tpu_custom_call.1} parent=0
    _
  %s8 = ssub.s32 1, %s6
  %s9 = scalar_select 0, %s8, %s6
  %11 = dma.hbm_to_smem %s0, 16, [#allocation7], [#allocation6]
  %s12 = sshll.u32 %s1, 4
  %s13 = int_to_ptr.vmem [resolvable:$true] %s12
  %15 = dma.vmem_to_smem %s13, 16, [#allocation8], [#allocation6]
  %s16 = sshll.u32 %s2, 4
  %s17 = int_to_ptr.vmem [resolvable:$true] %s16
  %19 = dma.vmem_to_smem %s17, 16, [#allocation9], [#allocation6]
  %20 = dma.done [#allocation6], 48
  %21 = sfence
  $region1: #{tpu_custom_call.1} parent=0
    #allocation10 [shape = 'u8[8192]{0}', space=vmem, size = 0x2000, scoped, tag = 'output window, operand 0']
    #allocation11 [shape = 's32[2]{0}', space=sflag, size = 0x8, scoped, tag = 'scoped memory for tpu_custom_call.1']
    %22 = vsyncpa [#allocation11], 0
    %s23 = scalar_lea.sflag [#allocation11], 1
    %24 = vsyncpa %s23, 0
    loop: start=0, step=1, limit=3
    $region2: #{tpu_custom_call.1} parent=1 // loop_pre_header
      _
    $region3: #{tpu_custom_call.1} parent=1 // loop_header
      %s26 = sphi 0, %s30
      %p27 = scmp.ge.s32.totalorder %s26, 3
      %s35 = sphi 0, %s37
      %s38 = sphi 0, %s35
      %s48 = sphi 0, %s38
    $region4: #{tpu_custom_call.1} parent=1 // loop_header_branch
      %29 = sbr.rel (%p27) target = $region8
    $region5: #{tpu_custom_call.1} parent=1 // loop_body
      %s31 = ssub.s32 %s26, 1
      %s32 = sadd.s32 %s26, 1
      %s33 = ssub.s32 %s26, %s32
      %p34 = scmp.eq.s32.totalorder %s33, 0
      %s36 = sadd.s32 %s35, 1
      %s37 = scalar_select %p34, %s35, %s36
      %p39 = pneg %p34
      %p40 = scmp.eq.s32.totalorder %s26, 1
      %p41 = por %p39, %p40
      %p42 = scmp.ne.s32.totalorder %s35, %s38
      %p43 = scmp.eq.s32.totalorder %s26, 0
      %p44 = por %p42, %p43
      %p45 = scmp.ne.s32.totalorder %s35, %s38
      %p46 = scmp.eq.s32.totalorder %s31, 1
      %p47 = por %p45, %p46
      %p49 = scmp.ne.s32.totalorder %s38, %s48
      %p50 = scmp.eq.s32.totalorder %s31, 0
      %p51 = por %p49, %p50
      %p52 = scmp.lt.s32.totalorder %s26, 2
      // Predicated region
      $region9: #{tpu_custom_call.1} parent=5 // pred_check
        %p53 = pneg %p52
      $region10: #{tpu_custom_call.1} parent=5 // pred_check_branch
        %55 = sbr.rel (%p53) target = $region12
      $region11: #{tpu_custom_call.1} parent=5 // pred_region
        %p56 = pneg %p44
        %p57 = pneg %p41
        %s58 = sand.u32 %s35, 1
        %s59 = scalar_lea.sflag [#allocation11], %s58
        %s60 = sand.u32 %s35, 1
        %s61 = smul.addr %s60, 8
        %s62 = scalar_lea.vmem [#allocation10], %s61
        %s63 = smul.u32 %s26, 8
        loop: start=0, step=1, limit=8
        $region13: #{tpu_custom_call.1} parent=11 // loop_pre_header
          _
        $region14: #{tpu_custom_call.1} parent=11 // loop_header
          %s65 = sphi 0, %s69
          %p66 = scmp.ge.s32.totalorder %s65, 8
        $region15: #{tpu_custom_call.1} parent=11 // loop_header_branch
          %68 = sbr.rel (%p66) target = $region19
        $region16: #{tpu_custom_call.1} parent=11 // loop_body
          %s70 = sadd.s32 %s63, %s65
          %s71 = sld [smem:[#allocation8 + %s70]]
          %s72 = smul.addr %s71, 16
          %s73 = scalar_lea.hbm %s4, %s72
          %s74 = scalar_lea.vmem [#allocation3], %s65
          // Predicated region
          $region20: #{tpu_custom_call.1} parent=16 // pred_check
            _
          $region21: #{tpu_custom_call.1} parent=16 // pred_check_branch
            %76 = sbr.rel target = $region23
          $region22: #{tpu_custom_call.1} parent=16 // pred_region
            %77 = sst [smem:[#allocation14]] [#allocation13]
            %78 = sst [smem:[#allocation15]] [#allocation12]
          $region23: #{tpu_custom_call.1} parent=16 // pred_fallthru
            _
          %80 = shalt.err (0)
          %s82 = sshll.u32 %s74, 4
          %s83 = int_to_ptr.vmem [resolvable:$true] %s82
          %85 = dma.hbm_to_vmem [thread:$0]  %s73, 16, %s83, [#allocation5]
          %s86 = smul.u32 %s70, 8
          %s87 = sld [smem:[#allocation7 + %s86]]
          %s88 = smul.addr %s87, 16
          %s89 = scalar_lea.hbm %s3, %s88
          %s90 = smul.u32 %s65, 8
          %s91 = scalar_lea.vmem [#allocation2], %s90
          %s92 = scalar_lea.sflag [#allocation5], 1
          // Predicated region
          $region24: #{tpu_custom_call.1} parent=16 // pred_check
            _
          $region25: #{tpu_custom_call.1} parent=16 // pred_check_branch
            %94 = sbr.rel target = $region27
          $region26: #{tpu_custom_call.1} parent=16 // pred_region
            %95 = sst [smem:[#allocation14]] [#allocation17]
            %96 = sst [smem:[#allocation15]] [#allocation16]
          $region27: #{tpu_custom_call.1} parent=16 // pred_fallthru
            _
          %98 = shalt.err (0)
          %s100 = sshll.u32 %s91, 4
          %s101 = int_to_ptr.vmem [resolvable:$true] %s100
          %103 = dma.hbm_to_vmem [thread:$0]  %s89, 16, %s101, %s92
          %s104 = sadd.s32 %s86, 1
          %s105 = sld [smem:[#allocation7 + %s104]]
          %s106 = smul.addr %s105, 16
          %s107 = scalar_lea.hbm %s3, %s106
          %s108 = sadd.s32 1, %s90
          %s109 = scalar_lea.vmem [#allocation2], %s108
          // Predicated region
          $region28: #{tpu_custom_call.1} parent=16 // pred_check
            _
          $region29: #{tpu_custom_call.1} parent=16 // pred_check_branch
            %111 = sbr.rel target = $region31
          $region30: #{tpu_custom_call.1} parent=16 // pred_region
            %112 = sst [smem:[#allocation14]] [#allocation19]
            %113 = sst [smem:[#allocation15]] [#allocation18]
          $region31: #{tpu_custom_call.1} parent=16 // pred_fallthru
            _
          %115 = shalt.err (0)
          %s117 = sshll.u32 %s109, 4
          %s118 = int_to_ptr.vmem [resolvable:$true] %s117
          %120 = dma.hbm_to_vmem [thread:$0]  %s107, 16, %s118, %s92
          %s121 = sadd.s32 %s86, 2
          %s122 = sld [smem:[#allocation7 + %s121]]
          %s123 = smul.addr %s122, 16
          %s124 = scalar_lea.hbm %s3, %s123
          %s125 = sadd.s32 2, %s90
          %s126 = scalar_lea.vmem [#allocation2], %s125
          // Predicated region
          $region32: #{tpu_custom_call.1} parent=16 // pred_check
            _
          $region33: #{tpu_custom_call.1} parent=16 // pred_check_branch
            %128 = sbr.rel target = $region35
          $region34: #{tpu_custom_call.1} parent=16 // pred_region
            %129 = sst [smem:[#allocation14]] [#allocation21]
            %130 = sst [smem:[#allocation15]] [#allocation20]
          $region35: #{tpu_custom_call.1} parent=16 // pred_fallthru
            _
          %132 = shalt.err (0)
          %s134 = sshll.u32 %s126, 4
          %s135 = int_to_ptr.vmem [resolvable:$true] %s134
          %137 = dma.hbm_to_vmem [thread:$0]  %s124, 16, %s135, %s92
          %s138 = sadd.s32 %s86, 3
          %s139 = sld [smem:[#allocation7 + %s138]]
          %s140 = smul.addr %s139, 16
          %s141 = scalar_lea.hbm %s3, %s140
          %s142 = sadd.s32 3, %s90
          %s143 = scalar_lea.vmem [#allocation2], %s142
          // Predicated region
          $region36: #{tpu_custom_call.1} parent=16 // pred_check
            _
          $region37: #{tpu_custom_call.1} parent=16 // pred_check_branch
            %145 = sbr.rel target = $region39
          $region38: #{tpu_custom_call.1} parent=16 // pred_region
            %146 = sst [smem:[#allocation14]] [#allocation23]
            %147 = sst [smem:[#allocation15]] [#allocation22]
          $region39: #{tpu_custom_call.1} parent=16 // pred_fallthru
            _
          %149 = shalt.err (0)
          %s151 = sshll.u32 %s143, 4
          %s152 = int_to_ptr.vmem [resolvable:$true] %s151
          %154 = dma.hbm_to_vmem [thread:$0]  %s141, 16, %s152, %s92
          %s155 = sadd.s32 %s86, 4
          %s156 = sld [smem:[#allocation7 + %s155]]
          %s157 = smul.addr %s156, 16
          %s158 = scalar_lea.hbm %s3, %s157
          %s159 = sadd.s32 4, %s90
          %s160 = scalar_lea.vmem [#allocation2], %s159
          // Predicated region
          $region40: #{tpu_custom_call.1} parent=16 // pred_check
            _
          $region41: #{tpu_custom_call.1} parent=16 // pred_check_branch
            %162 = sbr.rel target = $region43
          $region42: #{tpu_custom_call.1} parent=16 // pred_region
            %163 = sst [smem:[#allocation14]] [#allocation25]
            %164 = sst [smem:[#allocation15]] [#allocation24]
          $region43: #{tpu_custom_call.1} parent=16 // pred_fallthru
            _
          %166 = shalt.err (0)
          %s168 = sshll.u32 %s160, 4
          %s169 = int_to_ptr.vmem [resolvable:$true] %s168
          %171 = dma.hbm_to_vmem [thread:$0]  %s158, 16, %s169, %s92
          %s172 = sadd.s32 %s86, 5
          %s173 = sld [smem:[#allocation7 + %s172]]
          %s174 = smul.addr %s173, 16
          %s175 = scalar_lea.hbm %s3, %s174
          %s176 = sadd.s32 5, %s90
          %s177 = scalar_lea.vmem [#allocation2], %s176
          // Predicated region
          $region44: #{tpu_custom_call.1} parent=16 // pred_check
            _
          $region45: #{tpu_custom_call.1} parent=16 // pred_check_branch
            %179 = sbr.rel target = $region47
          $region46: #{tpu_custom_call.1} parent=16 // pred_region
            %180 = sst [smem:[#allocation14]] [#allocation27]
            %181 = sst [smem:[#allocation15]] [#allocation26]
          $region47: #{tpu_custom_call.1} parent=16 // pred_fallthru
            _
          %183 = shalt.err (0)
          %s185 = sshll.u32 %s177, 4
          %s186 = int_to_ptr.vmem [resolvable:$true] %s185
          %188 = dma.hbm_to_vmem [thread:$0]  %s175, 16, %s186, %s92
          %s189 = sadd.s32 %s86, 6
          %s190 = sld [smem:[#allocation7 + %s189]]
          %s191 = smul.addr %s190, 16
          %s192 = scalar_lea.hbm %s3, %s191
          %s193 = sadd.s32 6, %s90
          %s194 = scalar_lea.vmem [#allocation2], %s193
          // Predicated region
          $region48: #{tpu_custom_call.1} parent=16 // pred_check
            _
          $region49: #{tpu_custom_call.1} parent=16 // pred_check_branch
            %196 = sbr.rel target = $region51
          $region50: #{tpu_custom_call.1} parent=16 // pred_region
            %197 = sst [smem:[#allocation14]] [#allocation29]
            %198 = sst [smem:[#allocation15]] [#allocation28]
          $region51: #{tpu_custom_call.1} parent=16 // pred_fallthru
            _
          %200 = shalt.err (0)
          %s202 = sshll.u32 %s194, 4
          %s203 = int_to_ptr.vmem [resolvable:$true] %s202
          %205 = dma.hbm_to_vmem [thread:$0]  %s192, 16, %s203, %s92
          %s206 = sadd.s32 %s86, 7
          %s207 = sld [smem:[#allocation7 + %s206]]
          %s208 = smul.addr %s207, 16
          %s209 = scalar_lea.hbm %s3, %s208
          %s210 = sadd.s32 7, %s90
          %s211 = scalar_lea.vmem [#allocation2], %s210
          // Predicated region
          $region52: #{tpu_custom_call.1} parent=16 // pred_check
            _
          $region53: #{tpu_custom_call.1} parent=16 // pred_check_branch
            %213 = sbr.rel target = $region55
          $region54: #{tpu_custom_call.1} parent=16 // pred_region
            %214 = sst [smem:[#allocation14]] [#allocation31]
            %215 = sst [smem:[#allocation15]] [#allocation30]
          $region55: #{tpu_custom_call.1} parent=16 // pred_fallthru
            _
          %217 = shalt.err (0)
          %s219 = sshll.u32 %s211, 4
          %s220 = int_to_ptr.vmem [resolvable:$true] %s219
          %222 = dma.hbm_to_vmem [thread:$0]  %s209, 16, %s220, %s92
        $region17: #{tpu_custom_call.1} parent=11 // loop_footer
          %s69 = sadd.s32 1, %s65
        $region18: #{tpu_custom_call.1} parent=11 // loop_footer_branch
          %64 = sbr.rel target = $region14
        $region19: #{tpu_custom_call.1} parent=11 // loop_exit
          _
        loop: start=0, step=1, limit=8
        $region56: #{tpu_custom_call.1} parent=11 // loop_pre_header
          _
        $region57: #{tpu_custom_call.1} parent=11 // loop_header
          %s224 = sphi 0, %s228
          %p225 = scmp.ge.s32.totalorder %s224, 8
        $region58: #{tpu_custom_call.1} parent=11 // loop_header_branch
          %227 = sbr.rel (%p225) target = $region62
        $region59: #{tpu_custom_call.1} parent=11 // loop_body
          %s229 = sadd.s32 %s63, %s224
          %s230 = smul.u32 %s229, 8
          %s231 = sld [smem:[#allocation9 + %s230]]
          %s232 = smul.addr %s231, 16
          %s233 = scalar_lea.hbm %s4, %s232
          %s234 = smul.u32 %s224, 8
          %s235 = scalar_lea.vmem [#allocation4], %s234
          %s236 = scalar_lea.sflag [#allocation5], 2
          // Predicated region
          $region63: #{tpu_custom_call.1} parent=59 // pred_check
            _
          $region64: #{tpu_custom_call.1} parent=59 // pred_check_branch
            %238 = sbr.rel target = $region66
          $region65: #{tpu_custom_call.1} parent=59 // pred_region
            %239 = sst [smem:[#allocation14]] [#allocation33]
            %240 = sst [smem:[#allocation15]] [#allocation32]
          $region66: #{tpu_custom_call.1} parent=59 // pred_fallthru
            _
          %242 = shalt.err (0)
          %s244 = sshll.u32 %s235, 4
          %s245 = int_to_ptr.vmem [resolvable:$true] %s244
          %247 = dma.hbm_to_vmem [thread:$0]  %s233, 16, %s245, %s236
          %s248 = sadd.s32 %s230, 1
          %s249 = sld [smem:[#allocation9 + %s248]]
          %s250 = smul.addr %s249, 16
          %s251 = scalar_lea.hbm %s4, %s250
          %s252 = sadd.s32 1, %s234
          %s253 = scalar_lea.vmem [#allocation4], %s252
          // Predicated region
          $region67: #{tpu_custom_call.1} parent=59 // pred_check
            _
          $region68: #{tpu_custom_call.1} parent=59 // pred_check_branch
            %255 = sbr.rel target = $region70
          $region69: #{tpu_custom_call.1} parent=59 // pred_region
            %256 = sst [smem:[#allocation14]] [#allocation35]
            %257 = sst [smem:[#allocation15]] [#allocation34]
          $region70: #{tpu_custom_call.1} parent=59 // pred_fallthru
            _
          %259 = shalt.err (0)
          %s261 = sshll.u32 %s253, 4
          %s262 = int_to_ptr.vmem [resolvable:$true] %s261
          %264 = dma.hbm_to_vmem [thread:$0]  %s251, 16, %s262, %s236
          %s265 = sadd.s32 %s230, 2
          %s266 = sld [smem:[#allocation9 + %s265]]
          %s267 = smul.addr %s266, 16
          %s268 = scalar_lea.hbm %s4, %s267
          %s269 = sadd.s32 2, %s234
          %s270 = scalar_lea.vmem [#allocation4], %s269
          // Predicated region
          $region71: #{tpu_custom_call.1} parent=59 // pred_check
            _
          $region72: #{tpu_custom_call.1} parent=59 // pred_check_branch
            %272 = sbr.rel target = $region74
          $region73: #{tpu_custom_call.1} parent=59 // pred_region
            %273 = sst [smem:[#allocation14]] [#allocation37]
            %274 = sst [smem:[#allocation15]] [#allocation36]
          $region74: #{tpu_custom_call.1} parent=59 // pred_fallthru
            _
          %276 = shalt.err (0)
          %s278 = sshll.u32 %s270, 4
          %s279 = int_to_ptr.vmem [resolvable:$true] %s278
          %281 = dma.hbm_to_vmem [thread:$0]  %s268, 16, %s279, %s236
          %s282 = sadd.s32 %s230, 3
          %s283 = sld [smem:[#allocation9 + %s282]]
          %s284 = smul.addr %s283, 16
          %s285 = scalar_lea.hbm %s4, %s284
          %s286 = sadd.s32 3, %s234
          %s287 = scalar_lea.vmem [#allocation4], %s286
          // Predicated region
          $region75: #{tpu_custom_call.1} parent=59 // pred_check
            _
          $region76: #{tpu_custom_call.1} parent=59 // pred_check_branch
            %289 = sbr.rel target = $region78
          $region77: #{tpu_custom_call.1} parent=59 // pred_region
            %290 = sst [smem:[#allocation14]] [#allocation39]
            %291 = sst [smem:[#allocation15]] [#allocation38]
          $region78: #{tpu_custom_call.1} parent=59 // pred_fallthru
            _
          %293 = shalt.err (0)
          %s295 = sshll.u32 %s287, 4
          %s296 = int_to_ptr.vmem [resolvable:$true] %s295
          %298 = dma.hbm_to_vmem [thread:$0]  %s285, 16, %s296, %s236
          %s299 = sadd.s32 %s230, 4
          %s300 = sld [smem:[#allocation9 + %s299]]
          %s301 = smul.addr %s300, 16
          %s302 = scalar_lea.hbm %s4, %s301
          %s303 = sadd.s32 4, %s234
          %s304 = scalar_lea.vmem [#allocation4], %s303
          // Predicated region
          $region79: #{tpu_custom_call.1} parent=59 // pred_check
            _
          $region80: #{tpu_custom_call.1} parent=59 // pred_check_branch
            %306 = sbr.rel target = $region82
          $region81: #{tpu_custom_call.1} parent=59 // pred_region
            %307 = sst [smem:[#allocation14]] [#allocation41]
            %308 = sst [smem:[#allocation15]] [#allocation40]
          $region82: #{tpu_custom_call.1} parent=59 // pred_fallthru
            _
          %310 = shalt.err (0)
          %s312 = sshll.u32 %s304, 4
          %s313 = int_to_ptr.vmem [resolvable:$true] %s312
          %315 = dma.hbm_to_vmem [thread:$0]  %s302, 16, %s313, %s236
          %s316 = sadd.s32 %s230, 5
          %s317 = sld [smem:[#allocation9 + %s316]]
          %s318 = smul.addr %s317, 16
          %s319 = scalar_lea.hbm %s4, %s318
          %s320 = sadd.s32 5, %s234
          %s321 = scalar_lea.vmem [#allocation4], %s320
          // Predicated region
          $region83: #{tpu_custom_call.1} parent=59 // pred_check
            _
          $region84: #{tpu_custom_call.1} parent=59 // pred_check_branch
            %323 = sbr.rel target = $region86
          $region85: #{tpu_custom_call.1} parent=59 // pred_region
            %324 = sst [smem:[#allocation14]] [#allocation43]
            %325 = sst [smem:[#allocation15]] [#allocation42]
          $region86: #{tpu_custom_call.1} parent=59 // pred_fallthru
            _
          %327 = shalt.err (0)
          %s329 = sshll.u32 %s321, 4
          %s330 = int_to_ptr.vmem [resolvable:$true] %s329
          %332 = dma.hbm_to_vmem [thread:$0]  %s319, 16, %s330, %s236
          %s333 = sadd.s32 %s230, 6
          %s334 = sld [smem:[#allocation9 + %s333]]
          %s335 = smul.addr %s334, 16
          %s336 = scalar_lea.hbm %s4, %s335
          %s337 = sadd.s32 6, %s234
          %s338 = scalar_lea.vmem [#allocation4], %s337
          // Predicated region
          $region87: #{tpu_custom_call.1} parent=59 // pred_check
            _
          $region88: #{tpu_custom_call.1} parent=59 // pred_check_branch
            %340 = sbr.rel target = $region90
          $region89: #{tpu_custom_call.1} parent=59 // pred_region
            %341 = sst [smem:[#allocation14]] [#allocation45]
            %342 = sst [smem:[#allocation15]] [#allocation44]
          $region90: #{tpu_custom_call.1} parent=59 // pred_fallthru
            _
          %344 = shalt.err (0)
          %s346 = sshll.u32 %s338, 4
          %s347 = int_to_ptr.vmem [resolvable:$true] %s346
          %349 = dma.hbm_to_vmem [thread:$0]  %s336, 16, %s347, %s236
          %s350 = sadd.s32 %s230, 7
          %s351 = sld [smem:[#allocation9 + %s350]]
          %s352 = smul.addr %s351, 16
          %s353 = scalar_lea.hbm %s4, %s352
          %s354 = sadd.s32 7, %s234
          %s355 = scalar_lea.vmem [#allocation4], %s354
          // Predicated region
          $region91: #{tpu_custom_call.1} parent=59 // pred_check
            _
          $region92: #{tpu_custom_call.1} parent=59 // pred_check_branch
            %357 = sbr.rel target = $region94
          $region93: #{tpu_custom_call.1} parent=59 // pred_region
            %358 = sst [smem:[#allocation14]] [#allocation47]
            %359 = sst [smem:[#allocation15]] [#allocation46]
          $region94: #{tpu_custom_call.1} parent=59 // pred_fallthru
            _
          %361 = shalt.err (0)
          %s363 = sshll.u32 %s355, 4
          %s364 = int_to_ptr.vmem [resolvable:$true] %s363
          %366 = dma.hbm_to_vmem [thread:$0]  %s353, 16, %s364, %s236
        $region60: #{tpu_custom_call.1} parent=11 // loop_footer
          %s228 = sadd.s32 1, %s224
        $region61: #{tpu_custom_call.1} parent=11 // loop_footer_branch
          %223 = sbr.rel target = $region57
        $region62: #{tpu_custom_call.1} parent=11 // loop_exit
          _
        %s367 = smul.u32 8, 1
        %s368 = sshll.u32 %s367, 4
        %369 = dma.done [#allocation5], %s368
        %s370 = scalar_lea.sflag [#allocation5], 1
        %s371 = smul.u32 8, 8
        %s372 = smul.u32 %s371, 1
        %s373 = sshll.u32 %s372, 4
        %374 = dma.done %s370, %s373
        %v375 = vld [vmem:[#allocation3] sm:$0xff]
        %v376 = vld [vmem:[#allocation2] sm:$0x1]
        %v377 = vld [vmem:[#allocation2 + $0x8] sm:$0x1]
        %v378 = vld [vmem:[#allocation2 + $0x10] sm:$0x1]
        %v379 = vld [vmem:[#allocation2 + $0x18] sm:$0x1]
        %v380 = vld [vmem:[#allocation2 + $0x20] sm:$0x1]
        %v381 = vld [vmem:[#allocation2 + $0x28] sm:$0x1]
        %v382 = vld [vmem:[#allocation2 + $0x30] sm:$0x1]
        %v383 = vld [vmem:[#allocation2 + $0x38] sm:$0x1]
        %v384 = vadd.f32 %v376, 0.0
        %v385 = vadd.f32 %v377, 0.0
        %v386 = vadd.f32 %v378, 0.0
        %v387 = vadd.f32 %v379, 0.0
        %v388 = vadd.f32 %v380, 0.0
        %v389 = vadd.f32 %v381, 0.0
        %v390 = vadd.f32 %v382, 0.0
        %v391 = vadd.f32 %v383, 0.0
        %v392 = vld [vmem:[#allocation2 + $0x1] sm:$0x1]
        %v393 = vld [vmem:[#allocation2 + $0x9] sm:$0x1]
        %v394 = vld [vmem:[#allocation2 + $0x11] sm:$0x1]
        %v395 = vld [vmem:[#allocation2 + $0x19] sm:$0x1]
        %v396 = vld [vmem:[#allocation2 + $0x21] sm:$0x1]
        %v397 = vld [vmem:[#allocation2 + $0x29] sm:$0x1]
        %v398 = vld [vmem:[#allocation2 + $0x31] sm:$0x1]
        %v399 = vld [vmem:[#allocation2 + $0x39] sm:$0x1]
        %v400 = vadd.f32 %v384, %v392
        %v401 = vadd.f32 %v385, %v393
        %v402 = vadd.f32 %v386, %v394
        %v403 = vadd.f32 %v387, %v395
        %v404 = vadd.f32 %v388, %v396
        %v405 = vadd.f32 %v389, %v397
        %v406 = vadd.f32 %v390, %v398
        %v407 = vadd.f32 %v391, %v399
        %v408 = vld [vmem:[#allocation2 + $0x2] sm:$0x1]
        %v409 = vld [vmem:[#allocation2 + $0xa] sm:$0x1]
        %v410 = vld [vmem:[#allocation2 + $0x12] sm:$0x1]
        %v411 = vld [vmem:[#allocation2 + $0x1a] sm:$0x1]
        %v412 = vld [vmem:[#allocation2 + $0x22] sm:$0x1]
        %v413 = vld [vmem:[#allocation2 + $0x2a] sm:$0x1]
        %v414 = vld [vmem:[#allocation2 + $0x32] sm:$0x1]
        %v415 = vld [vmem:[#allocation2 + $0x3a] sm:$0x1]
        %v416 = vadd.f32 %v400, %v408
        %v417 = vadd.f32 %v401, %v409
        %v418 = vadd.f32 %v402, %v410
        %v419 = vadd.f32 %v403, %v411
        %v420 = vadd.f32 %v404, %v412
        %v421 = vadd.f32 %v405, %v413
        %v422 = vadd.f32 %v406, %v414
        %v423 = vadd.f32 %v407, %v415
        %v424 = vld [vmem:[#allocation2 + $0x3] sm:$0x1]
        %v425 = vld [vmem:[#allocation2 + $0xb] sm:$0x1]
        %v426 = vld [vmem:[#allocation2 + $0x13] sm:$0x1]
        %v427 = vld [vmem:[#allocation2 + $0x1b] sm:$0x1]
        %v428 = vld [vmem:[#allocation2 + $0x23] sm:$0x1]
        %v429 = vld [vmem:[#allocation2 + $0x2b] sm:$0x1]
        %v430 = vld [vmem:[#allocation2 + $0x33] sm:$0x1]
        %v431 = vld [vmem:[#allocation2 + $0x3b] sm:$0x1]
        %v432 = vadd.f32 %v416, %v424
        %v433 = vadd.f32 %v417, %v425
        %v434 = vadd.f32 %v418, %v426
        %v435 = vadd.f32 %v419, %v427
        %v436 = vadd.f32 %v420, %v428
        %v437 = vadd.f32 %v421, %v429
        %v438 = vadd.f32 %v422, %v430
        %v439 = vadd.f32 %v423, %v431
        %v440 = vld [vmem:[#allocation2 + $0x4] sm:$0x1]
        %v441 = vld [vmem:[#allocation2 + $0xc] sm:$0x1]
        %v442 = vld [vmem:[#allocation2 + $0x14] sm:$0x1]
        %v443 = vld [vmem:[#allocation2 + $0x1c] sm:$0x1]
        %v444 = vld [vmem:[#allocation2 + $0x24] sm:$0x1]
        %v445 = vld [vmem:[#allocation2 + $0x2c] sm:$0x1]
        %v446 = vld [vmem:[#allocation2 + $0x34] sm:$0x1]
        %v447 = vld [vmem:[#allocation2 + $0x3c] sm:$0x1]
        %v448 = vadd.f32 %v432, %v440
        %v449 = vadd.f32 %v433, %v441
        %v450 = vadd.f32 %v434, %v442
        %v451 = vadd.f32 %v435, %v443
        %v452 = vadd.f32 %v436, %v444
        %v453 = vadd.f32 %v437, %v445
        %v454 = vadd.f32 %v438, %v446
        %v455 = vadd.f32 %v439, %v447
        %v456 = vld [vmem:[#allocation2 + $0x5] sm:$0x1]
        %v457 = vld [vmem:[#allocation2 + $0xd] sm:$0x1]
        %v458 = vld [vmem:[#allocation2 + $0x15] sm:$0x1]
        %v459 = vld [vmem:[#allocation2 + $0x1d] sm:$0x1]
        %v460 = vld [vmem:[#allocation2 + $0x25] sm:$0x1]
        %v461 = vld [vmem:[#allocation2 + $0x2d] sm:$0x1]
        %v462 = vld [vmem:[#allocation2 + $0x35] sm:$0x1]
        %v463 = vld [vmem:[#allocation2 + $0x3d] sm:$0x1]
        %v464 = vadd.f32 %v448, %v456
        %v465 = vadd.f32 %v449, %v457
        %v466 = vadd.f32 %v450, %v458
        %v467 = vadd.f32 %v451, %v459
        %v468 = vadd.f32 %v452, %v460
        %v469 = vadd.f32 %v453, %v461
        %v470 = vadd.f32 %v454, %v462
        %v471 = vadd.f32 %v455, %v463
        %v472 = vld [vmem:[#allocation2 + $0x6] sm:$0x1]
        %v473 = vld [vmem:[#allocation2 + $0xe] sm:$0x1]
        %v474 = vld [vmem:[#allocation2 + $0x16] sm:$0x1]
        %v475 = vld [vmem:[#allocation2 + $0x1e] sm:$0x1]
        %v476 = vld [vmem:[#allocation2 + $0x26] sm:$0x1]
        %v477 = vld [vmem:[#allocation2 + $0x2e] sm:$0x1]
        %v478 = vld [vmem:[#allocation2 + $0x36] sm:$0x1]
        %v479 = vld [vmem:[#allocation2 + $0x3e] sm:$0x1]
        %v480 = vadd.f32 %v464, %v472
        %v481 = vadd.f32 %v465, %v473
        %v482 = vadd.f32 %v466, %v474
        %v483 = vadd.f32 %v467, %v475
        %v484 = vadd.f32 %v468, %v476
        %v485 = vadd.f32 %v469, %v477
        %v486 = vadd.f32 %v470, %v478
        %v487 = vadd.f32 %v471, %v479
        %v488 = vld [vmem:[#allocation2 + $0x7] sm:$0x1]
        %v489 = vld [vmem:[#allocation2 + $0xf] sm:$0x1]
        %v490 = vld [vmem:[#allocation2 + $0x17] sm:$0x1]
        %v491 = vld [vmem:[#allocation2 + $0x1f] sm:$0x1]
        %v492 = vld [vmem:[#allocation2 + $0x27] sm:$0x1]
        %v493 = vld [vmem:[#allocation2 + $0x2f] sm:$0x1]
        %v494 = vld [vmem:[#allocation2 + $0x37] sm:$0x1]
        %v495 = vld [vmem:[#allocation2 + $0x3f] sm:$0x1]
        %v496 = vadd.f32 %v480, %v488
        %v497 = vadd.f32 %v481, %v489
        %v498 = vadd.f32 %v482, %v490
        %v499 = vadd.f32 %v483, %v491
        %v500 = vadd.f32 %v484, %v492
        %v501 = vadd.f32 %v485, %v493
        %v502 = vadd.f32 %v486, %v494
        %v503 = vadd.f32 %v487, %v495
        %v504 = vlaneseq
        %v505 = vand.u32 %v504, 127
        %v507 = vrot.slane %v375, 1
        %v508 = vrot.slane %v375, 2
        %v509 = vrot.slane %v375, 3
        %v510 = vrot.slane %v375, 4
        %v511 = vrot.slane %v375, 5
        %v512 = vrot.slane %v375, 6
        %v513 = vrot.slane %v375, 7
        %v522 = vmul.f32 %v496, %v375
        %v523 = vmul.f32 %v497, %v507
        %v524 = vmul.f32 %v498, %v508
        %v525 = vmul.f32 %v499, %v509
        %v526 = vmul.f32 %v500, %v510
        %v527 = vmul.f32 %v501, %v511
        %v528 = vmul.f32 %v502, %v512
        %v529 = vmul.f32 %v503, %v513
        %v530 = vmax.f32 %v522, -10.0
        %v531 = vmax.f32 %v523, -10.0
        %v532 = vmax.f32 %v524, -10.0
        %v533 = vmax.f32 %v525, -10.0
        %v534 = vmax.f32 %v526, -10.0
        %v535 = vmax.f32 %v527, -10.0
        %v536 = vmax.f32 %v528, -10.0
        %v537 = vmax.f32 %v529, -10.0
        %v538 = vmin.f32 %v530, 10.0
        %v539 = vmin.f32 %v531, 10.0
        %v540 = vmin.f32 %v532, 10.0
        %v541 = vmin.f32 %v533, 10.0
        %v542 = vmin.f32 %v534, 10.0
        %v543 = vmin.f32 %v535, 10.0
        %v544 = vmin.f32 %v536, 10.0
        %v545 = vmin.f32 %v537, 10.0
        %vm546 = vcmp.lt.s32.totalorder %v505, 32
        %v547 = vsub.f32 0.0, %v538
        %v548 = vsub.f32 0.0, %v539
        %v549 = vsub.f32 0.0, %v540
        %v550 = vsub.f32 0.0, %v541
        %v551 = vsub.f32 0.0, %v542
        %v552 = vsub.f32 0.0, %v543
        %v553 = vsub.f32 0.0, %v544
        %v554 = vsub.f32 0.0, %v545
        %v555 = vmul.f32 %v547, 1.442695
        %v556 = vpow.pop %v555
        %v557 = vmul.f32 %v548, 1.442695
        %v558 = vpow.pop %v557
        %v559 = vmul.f32 %v549, 1.442695
        %v560 = vpow.pop %v559
        %v561 = vmul.f32 %v550, 1.442695
        %v562 = vpow.pop %v561
        %v563 = vmul.f32 %v551, 1.442695
        %v564 = vpow.pop %v563
        %v565 = vmul.f32 %v552, 1.442695
        %v566 = vpow.pop %v565
        %v567 = vmul.f32 %v553, 1.442695
        %v568 = vpow.pop %v567
        %v569 = vmul.f32 %v554, 1.442695
        %v570 = vpow.pop %v569
        %v571 = vadd.f32 %v556, 1.0
        %v572 = vlog2.pop %v571
        %v573 = vmul.f32 %v572, 0.6931472
        %v574 = vmul.f32 -0.5, %v556
        %v575 = vadd.f32 %v574, 1.0
        %v576 = vmul.f32 %v575, %v556
        %v577 = vand.u32 2147483647, %v556
        %vm578 = vcmp.lt.f32.partialorder %v577, 0.0004427343
        %v579 = vsel %vm578, %v576, %v573
        %v580 = vadd.f32 %v558, 1.0
        %v581 = vlog2.pop %v580
        %v582 = vmul.f32 %v581, 0.6931472
        %v583 = vmul.f32 -0.5, %v558
        %v584 = vadd.f32 %v583, 1.0
        %v585 = vmul.f32 %v584, %v558
        %v586 = vand.u32 2147483647, %v558
        %vm587 = vcmp.lt.f32.partialorder %v586, 0.0004427343
        %v588 = vsel %vm587, %v585, %v582
        %v589 = vadd.f32 %v560, 1.0
        %v590 = vlog2.pop %v589
        %v591 = vmul.f32 %v590, 0.6931472
        %v592 = vmul.f32 -0.5, %v560
        %v593 = vadd.f32 %v592, 1.0
        %v594 = vmul.f32 %v593, %v560
        %v595 = vand.u32 2147483647, %v560
        %vm596 = vcmp.lt.f32.partialorder %v595, 0.0004427343
        %v597 = vsel %vm596, %v594, %v591
        %v598 = vadd.f32 %v562, 1.0
        %v599 = vlog2.pop %v598
        %v600 = vmul.f32 %v599, 0.6931472
        %v601 = vmul.f32 -0.5, %v562
        %v602 = vadd.f32 %v601, 1.0
        %v603 = vmul.f32 %v602, %v562
        %v604 = vand.u32 2147483647, %v562
        %vm605 = vcmp.lt.f32.partialorder %v604, 0.0004427343
        %v606 = vsel %vm605, %v603, %v600
        %v607 = vadd.f32 %v564, 1.0
        %v608 = vlog2.pop %v607
        %v609 = vmul.f32 %v608, 0.6931472
        %v610 = vmul.f32 -0.5, %v564
        %v611 = vadd.f32 %v610, 1.0
        %v612 = vmul.f32 %v611, %v564
        %v613 = vand.u32 2147483647, %v564
        %vm614 = vcmp.lt.f32.partialorder %v613, 0.0004427343
        %v615 = vsel %vm614, %v612, %v609
        %v616 = vadd.f32 %v566, 1.0
        %v617 = vlog2.pop %v616
        %v618 = vmul.f32 %v617, 0.6931472
        %v619 = vmul.f32 -0.5, %v566
        %v620 = vadd.f32 %v619, 1.0
        %v621 = vmul.f32 %v620, %v566
        %v622 = vand.u32 2147483647, %v566
        %vm623 = vcmp.lt.f32.partialorder %v622, 0.0004427343
        %v624 = vsel %vm623, %v621, %v618
        %v625 = vadd.f32 %v568, 1.0
        %v626 = vlog2.pop %v625
        %v627 = vmul.f32 %v626, 0.6931472
        %v628 = vmul.f32 -0.5, %v568
        %v629 = vadd.f32 %v628, 1.0
        %v630 = vmul.f32 %v629, %v568
        %v631 = vand.u32 2147483647, %v568
        %vm632 = vcmp.lt.f32.partialorder %v631, 0.0004427343
        %v633 = vsel %vm632, %v630, %v627
        %v634 = vadd.f32 %v570, 1.0
        %v635 = vlog2.pop %v634
        %v636 = vmul.f32 %v635, 0.6931472
        %v637 = vmul.f32 -0.5, %v570
        %v638 = vadd.f32 %v637, 1.0
        %v639 = vmul.f32 %v638, %v570
        %v640 = vand.u32 2147483647, %v570
        %vm641 = vcmp.lt.f32.partialorder %v640, 0.0004427343
        %v642 = vsel %vm641, %v639, %v636
        %v643 = vsub.f32 0.0, %v579
        %v644 = vsub.f32 0.0, %v588
        %v645 = vsub.f32 0.0, %v597
        %v646 = vsub.f32 0.0, %v606
        %v647 = vsub.f32 0.0, %v615
        %v648 = vsub.f32 0.0, %v624
        %v649 = vsub.f32 0.0, %v633
        %v650 = vsub.f32 0.0, %v642
        %v659 = vrot.slane %v644, 7
        %vm660 = vcmask 1041409
        %v661 = vsel %vm660, %v659, %v643
        %v662 = vrot.slane %v645, 6
        %vm663 = vcmask 1042434
        %v664 = vsel %vm663, %v662, %v661
        %v665 = vrot.slane %v646, 5
        %vm666 = vcmask 1043459
        %v667 = vsel %vm666, %v665, %v664
        %v668 = vrot.slane %v647, 4
        %vm669 = vcmask 1044484
        %v670 = vsel %vm669, %v668, %v667
        %v671 = vrot.slane %v648, 3
        %vm672 = vcmask 1045509
        %v673 = vsel %vm672, %v671, %v670
        %v674 = vrot.slane %v649, 2
        %vm675 = vcmask 1046534
        %v676 = vsel %vm675, %v674, %v673
        %v677 = vrot.slane %v650, 1
        %vm678 = vcmask 1047559
        %v679 = vsel %vm678, %v677, %v676
        %v681 = vsel %vm546, %v679, 0.0
        %682 = vadd.xlane.f32.xlu0 %v681
        %v683 = vpop.xlane.xlu0 %682
        %v684 = vadd.f32 %v683, 0.0
        %s685 = scalar_lea.sflag [#allocation5], 2
        %s686 = sshll.u32 %s372, 4
        %687 = dma.done %s685, %s686
        %v688 = vld [vmem:[#allocation4] sm:$0x1]
        %v689 = vld [vmem:[#allocation4 + $0x8] sm:$0x1]
        %v690 = vld [vmem:[#allocation4 + $0x10] sm:$0x1]
        %v691 = vld [vmem:[#allocation4 + $0x18] sm:$0x1]
        %v692 = vld [vmem:[#allocation4 + $0x20] sm:$0x1]
        %v693 = vld [vmem:[#allocation4 + $0x28] sm:$0x1]
        %v694 = vld [vmem:[#allocation4 + $0x30] sm:$0x1]
        %v695 = vld [vmem:[#allocation4 + $0x38] sm:$0x1]
        %v696 = vmul.f32 %v688, %v375
        %v697 = vmul.f32 %v689, %v507
        %v698 = vmul.f32 %v690, %v508
        %v699 = vmul.f32 %v691, %v509
        %v700 = vmul.f32 %v692, %v510
        %v701 = vmul.f32 %v693, %v511
        %v702 = vmul.f32 %v694, %v512
        %v703 = vmul.f32 %v695, %v513
        %v712 = vrot.slane %v697, 7
        %v713 = vsel %vm660, %v712, %v696
        %v714 = vrot.slane %v698, 6
        %v715 = vsel %vm663, %v714, %v713
        %v716 = vrot.slane %v699, 5
        %v717 = vsel %vm666, %v716, %v715
        %v718 = vrot.slane %v700, 4
        %v719 = vsel %vm669, %v718, %v717
        %v720 = vrot.slane %v701, 3
        %v721 = vsel %vm672, %v720, %v719
        %v722 = vrot.slane %v702, 2
        %v723 = vsel %vm675, %v722, %v721
        %v724 = vrot.slane %v703, 1
        %v725 = vsel %vm678, %v724, %v723
        %727 = vadd.xlane.f32.xlu0 %v725
        %v728 = vpop.xlane.xlu0 %727
        %v729 = vadd.f32 %v728, 0.0
        %v730 = vmax.f32 %v729, -10.0
        %v731 = vmin.f32 %v730, 10.0
        %v732 = vsub.f32 0.0, %v731
        %v733 = vsub.f32 0.0, %v732
        %v734 = vmul.f32 %v733, 1.442695
        %v735 = vpow.pop %v734
        %v736 = vadd.f32 %v735, 1.0
        %v737 = vlog2.pop %v736
        %v738 = vmul.f32 %v737, 0.6931472
        %v739 = vmul.f32 -0.5, %v735
        %v740 = vadd.f32 %v739, 1.0
        %v741 = vmul.f32 %v740, %v735
        %v742 = vand.u32 2147483647, %v735
        %vm743 = vcmp.lt.f32.partialorder %v742, 0.0004427343
        %v744 = vsel %vm743, %v741, %v738
        %v745 = vsub.f32 0.0, %v744
        %v746 = vadd.f32 %v745, 0.0
        %v747 = vld [vmem:[#allocation4 + $0x1] sm:$0x1]
        %v748 = vld [vmem:[#allocation4 + $0x9] sm:$0x1]
        %v749 = vld [vmem:[#allocation4 + $0x11] sm:$0x1]
        %v750 = vld [vmem:[#allocation4 + $0x19] sm:$0x1]
        %v751 = vld [vmem:[#allocation4 + $0x21] sm:$0x1]
        %v752 = vld [vmem:[#allocation4 + $0x29] sm:$0x1]
        %v753 = vld [vmem:[#allocation4 + $0x31] sm:$0x1]
        %v754 = vld [vmem:[#allocation4 + $0x39] sm:$0x1]
        %v755 = vmul.f32 %v747, %v375
        %v756 = vmul.f32 %v748, %v507
        %v757 = vmul.f32 %v749, %v508
        %v758 = vmul.f32 %v750, %v509
        %v759 = vmul.f32 %v751, %v510
        %v760 = vmul.f32 %v752, %v511
        %v761 = vmul.f32 %v753, %v512
        %v762 = vmul.f32 %v754, %v513
        %v771 = vrot.slane %v756, 7
        %v772 = vsel %vm660, %v771, %v755
        %v773 = vrot.slane %v757, 6
        %v774 = vsel %vm663, %v773, %v772
        %v775 = vrot.slane %v758, 5
        %v776 = vsel %vm666, %v775, %v774
        %v777 = vrot.slane %v759, 4
        %v778 = vsel %vm669, %v777, %v776
        %v779 = vrot.slane %v760, 3
        %v780 = vsel %vm672, %v779, %v778
        %v781 = vrot.slane %v761, 2
        %v782 = vsel %vm675, %v781, %v780
        %v783 = vrot.slane %v762, 1
        %v784 = vsel %vm678, %v783, %v782
        %786 = vadd.xlane.f32.xlu0 %v784
        %v787 = vpop.xlane.xlu0 %786
        %v788 = vadd.f32 %v787, 0.0
        %v789 = vmax.f32 %v788, -10.0
        %v790 = vmin.f32 %v789, 10.0
        %v791 = vsub.f32 0.0, %v790
        %v792 = vsub.f32 0.0, %v791
        %v793 = vmul.f32 %v792, 1.442695
        %v794 = vpow.pop %v793
        %v795 = vadd.f32 %v794, 1.0
        %v796 = vlog2.pop %v795
        %v797 = vmul.f32 %v796, 0.6931472
        %v798 = vmul.f32 -0.5, %v794
        %v799 = vadd.f32 %v798, 1.0
        %v800 = vmul.f32 %v799, %v794
        %v801 = vand.u32 2147483647, %v794
        %vm802 = vcmp.lt.f32.partialorder %v801, 0.0004427343
        %v803 = vsel %vm802, %v800, %v797
        %v804 = vsub.f32 0.0, %v803
        %v805 = vadd.f32 %v746, %v804
        %v806 = vld [vmem:[#allocation4 + $0x2] sm:$0x1]
        %v807 = vld [vmem:[#allocation4 + $0xa] sm:$0x1]
        %v808 = vld [vmem:[#allocation4 + $0x12] sm:$0x1]
        %v809 = vld [vmem:[#allocation4 + $0x1a] sm:$0x1]
        %v810 = vld [vmem:[#allocation4 + $0x22] sm:$0x1]
        %v811 = vld [vmem:[#allocation4 + $0x2a] sm:$0x1]
        %v812 = vld [vmem:[#allocation4 + $0x32] sm:$0x1]
        %v813 = vld [vmem:[#allocation4 + $0x3a] sm:$0x1]
        %v814 = vmul.f32 %v806, %v375
        %v815 = vmul.f32 %v807, %v507
        %v816 = vmul.f32 %v808, %v508
        %v817 = vmul.f32 %v809, %v509
        %v818 = vmul.f32 %v810, %v510
        %v819 = vmul.f32 %v811, %v511
        %v820 = vmul.f32 %v812, %v512
        %v821 = vmul.f32 %v813, %v513
        %v830 = vrot.slane %v815, 7
        %v831 = vsel %vm660, %v830, %v814
        %v832 = vrot.slane %v816, 6
        %v833 = vsel %vm663, %v832, %v831
        %v834 = vrot.slane %v817, 5
        %v835 = vsel %vm666, %v834, %v833
        %v836 = vrot.slane %v818, 4
        %v837 = vsel %vm669, %v836, %v835
        %v838 = vrot.slane %v819, 3
        %v839 = vsel %vm672, %v838, %v837
        %v840 = vrot.slane %v820, 2
        %v841 = vsel %vm675, %v840, %v839
        %v842 = vrot.slane %v821, 1
        %v843 = vsel %vm678, %v842, %v841
        %845 = vadd.xlane.f32.xlu0 %v843
        %v846 = vpop.xlane.xlu0 %845
        %v847 = vadd.f32 %v846, 0.0
        %v848 = vmax.f32 %v847, -10.0
        %v849 = vmin.f32 %v848, 10.0
        %v850 = vsub.f32 0.0, %v849
        %v851 = vsub.f32 0.0, %v850
        %v852 = vmul.f32 %v851, 1.442695
        %v853 = vpow.pop %v852
        %v854 = vadd.f32 %v853, 1.0
        %v855 = vlog2.pop %v854
        %v856 = vmul.f32 %v855, 0.6931472
        %v857 = vmul.f32 -0.5, %v853
        %v858 = vadd.f32 %v857, 1.0
        %v859 = vmul.f32 %v858, %v853
        %v860 = vand.u32 2147483647, %v853
        %vm861 = vcmp.lt.f32.partialorder %v860, 0.0004427343
        %v862 = vsel %vm861, %v859, %v856
        %v863 = vsub.f32 0.0, %v862
        %v864 = vadd.f32 %v805, %v863
        %v865 = vld [vmem:[#allocation4 + $0x3] sm:$0x1]
        %v866 = vld [vmem:[#allocation4 + $0xb] sm:$0x1]
        %v867 = vld [vmem:[#allocation4 + $0x13] sm:$0x1]
        %v868 = vld [vmem:[#allocation4 + $0x1b] sm:$0x1]
        %v869 = vld [vmem:[#allocation4 + $0x23] sm:$0x1]
        %v870 = vld [vmem:[#allocation4 + $0x2b] sm:$0x1]
        %v871 = vld [vmem:[#allocation4 + $0x33] sm:$0x1]
        %v872 = vld [vmem:[#allocation4 + $0x3b] sm:$0x1]
        %v873 = vmul.f32 %v865, %v375
        %v874 = vmul.f32 %v866, %v507
        %v875 = vmul.f32 %v867, %v508
        %v876 = vmul.f32 %v868, %v509
        %v877 = vmul.f32 %v869, %v510
        %v878 = vmul.f32 %v870, %v511
        %v879 = vmul.f32 %v871, %v512
        %v880 = vmul.f32 %v872, %v513
        %v889 = vrot.slane %v874, 7
        %v890 = vsel %vm660, %v889, %v873
        %v891 = vrot.slane %v875, 6
        %v892 = vsel %vm663, %v891, %v890
        %v893 = vrot.slane %v876, 5
        %v894 = vsel %vm666, %v893, %v892
        %v895 = vrot.slane %v877, 4
        %v896 = vsel %vm669, %v895, %v894
        %v897 = vrot.slane %v878, 3
        %v898 = vsel %vm672, %v897, %v896
        %v899 = vrot.slane %v879, 2
        %v900 = vsel %vm675, %v899, %v898
        %v901 = vrot.slane %v880, 1
        %v902 = vsel %vm678, %v901, %v900
        %904 = vadd.xlane.f32.xlu0 %v902
        %v905 = vpop.xlane.xlu0 %904
        %v906 = vadd.f32 %v905, 0.0
        %v907 = vmax.f32 %v906, -10.0
        %v908 = vmin.f32 %v907, 10.0
        %v909 = vsub.f32 0.0, %v908
        %v910 = vsub.f32 0.0, %v909
        %v911 = vmul.f32 %v910, 1.442695
        %v912 = vpow.pop %v911
        %v913 = vadd.f32 %v912, 1.0
        %v914 = vlog2.pop %v913
        %v915 = vmul.f32 %v914, 0.6931472
        %v916 = vmul.f32 -0.5, %v912
        %v917 = vadd.f32 %v916, 1.0
        %v918 = vmul.f32 %v917, %v912
        %v919 = vand.u32 2147483647, %v912
        %vm920 = vcmp.lt.f32.partialorder %v919, 0.0004427343
        %v921 = vsel %vm920, %v918, %v915
        %v922 = vsub.f32 0.0, %v921
        %v923 = vadd.f32 %v864, %v922
        %v924 = vld [vmem:[#allocation4 + $0x4] sm:$0x1]
        %v925 = vld [vmem:[#allocation4 + $0xc] sm:$0x1]
        %v926 = vld [vmem:[#allocation4 + $0x14] sm:$0x1]
        %v927 = vld [vmem:[#allocation4 + $0x1c] sm:$0x1]
        %v928 = vld [vmem:[#allocation4 + $0x24] sm:$0x1]
        %v929 = vld [vmem:[#allocation4 + $0x2c] sm:$0x1]
        %v930 = vld [vmem:[#allocation4 + $0x34] sm:$0x1]
        %v931 = vld [vmem:[#allocation4 + $0x3c] sm:$0x1]
        %v932 = vmul.f32 %v924, %v375
        %v933 = vmul.f32 %v925, %v507
        %v934 = vmul.f32 %v926, %v508
        %v935 = vmul.f32 %v927, %v509
        %v936 = vmul.f32 %v928, %v510
        %v937 = vmul.f32 %v929, %v511
        %v938 = vmul.f32 %v930, %v512
        %v939 = vmul.f32 %v931, %v513
        %v948 = vrot.slane %v933, 7
        %v949 = vsel %vm660, %v948, %v932
        %v950 = vrot.slane %v934, 6
        %v951 = vsel %vm663, %v950, %v949
        %v952 = vrot.slane %v935, 5
        %v953 = vsel %vm666, %v952, %v951
        %v954 = vrot.slane %v936, 4
        %v955 = vsel %vm669, %v954, %v953
        %v956 = vrot.slane %v937, 3
        %v957 = vsel %vm672, %v956, %v955
        %v958 = vrot.slane %v938, 2
        %v959 = vsel %vm675, %v958, %v957
        %v960 = vrot.slane %v939, 1
        %v961 = vsel %vm678, %v960, %v959
        %963 = vadd.xlane.f32.xlu0 %v961
        %v964 = vpop.xlane.xlu0 %963
        %v965 = vadd.f32 %v964, 0.0
        %v966 = vmax.f32 %v965, -10.0
        %v967 = vmin.f32 %v966, 10.0
        %v968 = vsub.f32 0.0, %v967
        %v969 = vsub.f32 0.0, %v968
        %v970 = vmul.f32 %v969, 1.442695
        %v971 = vpow.pop %v970
        %v972 = vadd.f32 %v971, 1.0
        %v973 = vlog2.pop %v972
        %v974 = vmul.f32 %v973, 0.6931472
        %v975 = vmul.f32 -0.5, %v971
        %v976 = vadd.f32 %v975, 1.0
        %v977 = vmul.f32 %v976, %v971
        %v978 = vand.u32 2147483647, %v971
        %vm979 = vcmp.lt.f32.partialorder %v978, 0.0004427343
        %v980 = vsel %vm979, %v977, %v974
        %v981 = vsub.f32 0.0, %v980
        %v982 = vadd.f32 %v923, %v981
        %v983 = vld [vmem:[#allocation4 + $0x5] sm:$0x1]
        %v984 = vld [vmem:[#allocation4 + $0xd] sm:$0x1]
        %v985 = vld [vmem:[#allocation4 + $0x15] sm:$0x1]
        %v986 = vld [vmem:[#allocation4 + $0x1d] sm:$0x1]
        %v987 = vld [vmem:[#allocation4 + $0x25] sm:$0x1]
        %v988 = vld [vmem:[#allocation4 + $0x2d] sm:$0x1]
        %v989 = vld [vmem:[#allocation4 + $0x35] sm:$0x1]
        %v990 = vld [vmem:[#allocation4 + $0x3d] sm:$0x1]
        %v991 = vmul.f32 %v983, %v375
        %v992 = vmul.f32 %v984, %v507
        %v993 = vmul.f32 %v985, %v508
        %v994 = vmul.f32 %v986, %v509
        %v995 = vmul.f32 %v987, %v510
        %v996 = vmul.f32 %v988, %v511
        %v997 = vmul.f32 %v989, %v512
        %v998 = vmul.f32 %v990, %v513
        %v1007 = vrot.slane %v992, 7
        %v1008 = vsel %vm660, %v1007, %v991
        %v1009 = vrot.slane %v993, 6
        %v1010 = vsel %vm663, %v1009, %v1008
        %v1011 = vrot.slane %v994, 5
        %v1012 = vsel %vm666, %v1011, %v1010
        %v1013 = vrot.slane %v995, 4
        %v1014 = vsel %vm669, %v1013, %v1012
        %v1015 = vrot.slane %v996, 3
        %v1016 = vsel %vm672, %v1015, %v1014
        %v1017 = vrot.slane %v997, 2
        %v1018 = vsel %vm675, %v1017, %v1016
        %v1019 = vrot.slane %v998, 1
        %v1020 = vsel %vm678, %v1019, %v1018
        %1022 = vadd.xlane.f32.xlu0 %v1020
        %v1023 = vpop.xlane.xlu0 %1022
        %v1024 = vadd.f32 %v1023, 0.0
        %v1025 = vmax.f32 %v1024, -10.0
        %v1026 = vmin.f32 %v1025, 10.0
        %v1027 = vsub.f32 0.0, %v1026
        %v1028 = vsub.f32 0.0, %v1027
        %v1029 = vmul.f32 %v1028, 1.442695
        %v1030 = vpow.pop %v1029
        %v1031 = vadd.f32 %v1030, 1.0
        %v1032 = vlog2.pop %v1031
        %v1033 = vmul.f32 %v1032, 0.6931472
        %v1034 = vmul.f32 -0.5, %v1030
        %v1035 = vadd.f32 %v1034, 1.0
        %v1036 = vmul.f32 %v1035, %v1030
        %v1037 = vand.u32 2147483647, %v1030
        %vm1038 = vcmp.lt.f32.partialorder %v1037, 0.0004427343
        %v1039 = vsel %vm1038, %v1036, %v1033
        %v1040 = vsub.f32 0.0, %v1039
        %v1041 = vadd.f32 %v982, %v1040
        %v1042 = vld [vmem:[#allocation4 + $0x6] sm:$0x1]
        %v1043 = vld [vmem:[#allocation4 + $0xe] sm:$0x1]
        %v1044 = vld [vmem:[#allocation4 + $0x16] sm:$0x1]
        %v1045 = vld [vmem:[#allocation4 + $0x1e] sm:$0x1]
        %v1046 = vld [vmem:[#allocation4 + $0x26] sm:$0x1]
        %v1047 = vld [vmem:[#allocation4 + $0x2e] sm:$0x1]
        %v1048 = vld [vmem:[#allocation4 + $0x36] sm:$0x1]
        %v1049 = vld [vmem:[#allocation4 + $0x3e] sm:$0x1]
        %v1050 = vmul.f32 %v1042, %v375
        %v1051 = vmul.f32 %v1043, %v507
        %v1052 = vmul.f32 %v1044, %v508
        %v1053 = vmul.f32 %v1045, %v509
        %v1054 = vmul.f32 %v1046, %v510
        %v1055 = vmul.f32 %v1047, %v511
        %v1056 = vmul.f32 %v1048, %v512
        %v1057 = vmul.f32 %v1049, %v513
        %v1066 = vrot.slane %v1051, 7
        %v1067 = vsel %vm660, %v1066, %v1050
        %v1068 = vrot.slane %v1052, 6
        %v1069 = vsel %vm663, %v1068, %v1067
        %v1070 = vrot.slane %v1053, 5
        %v1071 = vsel %vm666, %v1070, %v1069
        %v1072 = vrot.slane %v1054, 4
        %v1073 = vsel %vm669, %v1072, %v1071
        %v1074 = vrot.slane %v1055, 3
        %v1075 = vsel %vm672, %v1074, %v1073
        %v1076 = vrot.slane %v1056, 2
        %v1077 = vsel %vm675, %v1076, %v1075
        %v1078 = vrot.slane %v1057, 1
        %v1079 = vsel %vm678, %v1078, %v1077
        %1081 = vadd.xlane.f32.xlu0 %v1079
        %v1082 = vpop.xlane.xlu0 %1081
        %v1083 = vadd.f32 %v1082, 0.0
        %v1084 = vmax.f32 %v1083, -10.0
        %v1085 = vmin.f32 %v1084, 10.0
        %v1086 = vsub.f32 0.0, %v1085
        %v1087 = vsub.f32 0.0, %v1086
        %v1088 = vmul.f32 %v1087, 1.442695
        %v1089 = vpow.pop %v1088
        %v1090 = vadd.f32 %v1089, 1.0
        %v1091 = vlog2.pop %v1090
        %v1092 = vmul.f32 %v1091, 0.6931472
        %v1093 = vmul.f32 -0.5, %v1089
        %v1094 = vadd.f32 %v1093, 1.0
        %v1095 = vmul.f32 %v1094, %v1089
        %v1096 = vand.u32 2147483647, %v1089
        %vm1097 = vcmp.lt.f32.partialorder %v1096, 0.0004427343
        %v1098 = vsel %vm1097, %v1095, %v1092
        %v1099 = vsub.f32 0.0, %v1098
        %v1100 = vadd.f32 %v1041, %v1099
        %v1101 = vld [vmem:[#allocation4 + $0x7] sm:$0x1]
        %v1102 = vld [vmem:[#allocation4 + $0xf] sm:$0x1]
        %v1103 = vld [vmem:[#allocation4 + $0x17] sm:$0x1]
        %v1104 = vld [vmem:[#allocation4 + $0x1f] sm:$0x1]
        %v1105 = vld [vmem:[#allocation4 + $0x27] sm:$0x1]
        %v1106 = vld [vmem:[#allocation4 + $0x2f] sm:$0x1]
        %v1107 = vld [vmem:[#allocation4 + $0x37] sm:$0x1]
        %v1108 = vld [vmem:[#allocation4 + $0x3f] sm:$0x1]
        %v1109 = vmul.f32 %v1101, %v375
        %v1110 = vmul.f32 %v1102, %v507
        %v1111 = vmul.f32 %v1103, %v508
        %v1112 = vmul.f32 %v1104, %v509
        %v1113 = vmul.f32 %v1105, %v510
        %v1114 = vmul.f32 %v1106, %v511
        %v1115 = vmul.f32 %v1107, %v512
        %v1116 = vmul.f32 %v1108, %v513
        %v1125 = vrot.slane %v1110, 7
        %v1126 = vsel %vm660, %v1125, %v1109
        %v1127 = vrot.slane %v1111, 6
        %v1128 = vsel %vm663, %v1127, %v1126
        %v1129 = vrot.slane %v1112, 5
        %v1130 = vsel %vm666, %v1129, %v1128
        %v1131 = vrot.slane %v1113, 4
        %v1132 = vsel %vm669, %v1131, %v1130
        %v1133 = vrot.slane %v1114, 3
        %v1134 = vsel %vm672, %v1133, %v1132
        %v1135 = vrot.slane %v1115, 2
        %v1136 = vsel %vm675, %v1135, %v1134
        %v1137 = vrot.slane %v1116, 1
        %v1138 = vsel %vm678, %v1137, %v1136
        %1140 = vadd.xlane.f32.xlu0 %v1138
        %v1141 = vpop.xlane.xlu0 %1140
        %v1142 = vadd.f32 %v1141, 0.0
        %v1143 = vmax.f32 %v1142, -10.0
        %v1144 = vmin.f32 %v1143, 10.0
        %v1145 = vsub.f32 0.0, %v1144
        %v1146 = vsub.f32 0.0, %v1145
        %v1147 = vmul.f32 %v1146, 1.442695
        %v1148 = vpow.pop %v1147
        %v1149 = vadd.f32 %v1148, 1.0
        %v1150 = vlog2.pop %v1149
        %v1151 = vmul.f32 %v1150, 0.6931472
        %v1152 = vmul.f32 -0.5, %v1148
        %v1153 = vadd.f32 %v1152, 1.0
        %v1154 = vmul.f32 %v1153, %v1148
        %v1155 = vand.u32 2147483647, %v1148
        %vm1156 = vcmp.lt.f32.partialorder %v1155, 0.0004427343
        %v1157 = vsel %vm1156, %v1154, %v1151
        %v1158 = vsub.f32 0.0, %v1157
        %v1159 = vadd.f32 %v1100, %v1158
        %v1160 = vlaneseq
        %v1161 = vshrl.u32 %v1160, 7
        %v1162 = vstv %s63
        %v1163 = vadd.s32 %v1162, %v1161
        %vm1164 = vcmp.lt.s32.totalorder %v1163, 14
        %v1165 = vadd.f32 %v684, %v1159
        %v1166 = vsel %vm1164, %v1165, 0.0
        %vm1167 = vcmask 7168
        %v1168 = vsel %vm1167, %v1166, 0.0
        %1169 = vadd.xlane.f32.xlu0 %v1168
        %v1170 = vpop.xlane.xlu0 %1169
        %v1171 = vrot.slane %v1170, 4
        %v1172 = vadd.f32 %v1170, %v1171
        %v1173 = vrot.slane %v1172, 2
        %v1174 = vadd.f32 %v1172, %v1173
        %v1175 = vrot.slane %v1174, 1
        %v1176 = vadd.f32 %v1174, %v1175
        %s1177 = vtos %v1176
        %v1178 = vstv %s1177
        %1179 = vst [vmem:[%s62] sm:$0xff] %v1178
        %s1180 = sand.u32 %s35, 1
        %s1181 = scalar_lea.sflag [#allocation11], %s1180
        %s1182 = sand.u32 %s35, 1
        %s1183 = smul.addr %s1182, 8
        %s1184 = scalar_lea.vmem [#allocation10], %s1183
        // Predicated region
        $region95: #{tpu_custom_call.1} parent=11 // pred_check
          %p1185 = pneg %p41
        $region96: #{tpu_custom_call.1} parent=11 // pred_check_branch
          %1187 = sbr.rel (%p1185) target = $region98
        $region97: #{tpu_custom_call.1} parent=11 // pred_region
          %s1189 = ssub.s32 128, 128
          %1190 = vsyncadd %s1181, %s1189
          %s1191 = smul.addr %s26, 128
          %s1192 = scalar_lea.hbm %s5, %s1191
          %s1194 = sshll.u32 %s1184, 4
          %s1195 = int_to_ptr.vmem [resolvable:$true] %s1194
          %1197 = dma.vmem_to_hbm [thread:$0]  %s1195, 128, %s1192, %s1181
        $region98: #{tpu_custom_call.1} parent=11 // pred_fallthru
          _
      $region12: #{tpu_custom_call.1} parent=5 // pred_fallthru
        _
      %p1198 = scmp.le.s32.totalorder 1, %s26
      // Predicated region
      $region99: #{tpu_custom_call.1} parent=5 // pred_check
        %p1199 = pneg %p1198
      $region100: #{tpu_custom_call.1} parent=5 // pred_check_branch
        %1201 = sbr.rel (%p1199) target = $region102
      $region101: #{tpu_custom_call.1} parent=5 // pred_region
        %s1202 = ssub.s32 %s26, 1
        // Predicated region
        $region103: #{tpu_custom_call.1} parent=101 // pred_check
          %p1203 = pneg %p47
        $region104: #{tpu_custom_call.1} parent=101 // pred_check_branch
          %1205 = sbr.rel (%p1203) target = $region106
        $region105: #{tpu_custom_call.1} parent=101 // pred_region
          %s1206 = sand.u32 %s38, 1
          %s1207 = scalar_lea.sflag [#allocation11], %s1206
          %s1208 = sand.u32 %s38, 1
          %s1209 = smul.addr %s1208, 8
          %s1210 = scalar_lea.vmem [#allocation10], %s1209
          %1211 = dma.done %s1207, 128
        $region106: #{tpu_custom_call.1} parent=101 // pred_fallthru
          _
      $region102: #{tpu_custom_call.1} parent=5 // pred_fallthru
        _
    $region6: #{tpu_custom_call.1} parent=1 // loop_footer
      %s30 = sadd.s32 1, %s26
    $region7: #{tpu_custom_call.1} parent=1 // loop_footer_branch
      %25 = sbr.rel target = $region3
    $region8: #{tpu_custom_call.1} parent=1 // loop_exit
      _
    %1212 = vsyncpa [#allocation11], 1
    %s1213 = scalar_lea.sflag [#allocation11], 1
    %1214 = vsyncpa %s1213, 1
  %1215 = vsyncmov [#allocation5]
  %s1216 = vpop.sfrf %1215
  %p1217 = scmp.eq.s32.totalorder %s1216, 0
  %p1218 = pneg %p1217
  %1220 = shalt.err (%p1218)
  %s1221 = scalar_lea.sflag [#allocation5], 1
  %1222 = vsyncmov %s1221
  %s1223 = vpop.sfrf %1222
  %p1224 = scmp.eq.s32.totalorder %s1223, 0
  %p1225 = pneg %p1224
  %1227 = shalt.err (%p1225)
  %s1228 = scalar_lea.sflag [#allocation5], 2
  %1229 = vsyncmov %s1228
  %s1230 = vpop.sfrf %1229
  %p1231 = scmp.eq.s32.totalorder %s1230, 0
  %p1232 = pneg %p1231
  %1234 = shalt.err (%p1232)

</llo_original>
